<compile_context>
chip_gen: v7x
topology: tpu7x:2x2x1
jax: 0.10.0
libtpu: 0.0.40
codegen_flags: <defaults>
</compile_context>

<pallas_src>
import math
import jax
import jax.numpy as jnp
from jax import lax
from jax.experimental import pallas as pl
from jax.experimental.pallas import tpu as pltpu

# ---- model config (small, consistent with the module) ----
S = 8        # seq_len
B = 2        # batch
D = 32       # d_model
NHEAD = 4
HD = D // NHEAD
FF = 64      # dim_feedforward
EPS = 1e-5
R = S * B    # batch folded into rows; row i == (s = i // B, b = i % B)
NEG = -1e30  # additive mask value for cross-batch attention scores

WLANES = 3 * D          # 96: widest weight matrix (in_proj.T)
WROWS = 3 * D + FF      # 160: rows of the packed weight slab
VROWS = 8               # packed vector slab rows


def _layernorm(x, gamma, beta):
    mean = jnp.mean(x, axis=-1, keepdims=True)
    var = jnp.mean((x - mean) ** 2, axis=-1, keepdims=True)
    return (x - mean) * lax.rsqrt(var + EPS) * gamma + beta


def decoder_layer_kernel(x_ref, w_ref, v_ref, o_ref):
    x = x_ref[...]                                                  # [R, D], rows = (s, b)

    # --- unpack weight slab (static, 8-aligned sublane offsets, lane slices from 0) ---
    w_in = w_ref[0:D, :]                                            # [D, 3D]
    w_out = w_ref[D:2 * D, 0:D]                                     # [D, D] (= out_proj_weight.T)
    w1 = w_ref[2 * D:3 * D, 0:FF]                                   # [D, FF]
    w2 = w_ref[3 * D:3 * D + FF, 0:D]                               # [FF, D]

    # --- unpack vector slab ---
    b_in = v_ref[0, :]                                              # [3D]
    b_out = v_ref[1, 0:D]
    g1 = v_ref[2, 0:D]
    be1 = v_ref[3, 0:D]
    b1 = v_ref[4, 0:FF]
    b2 = v_ref[5, 0:D]
    g2 = v_ref[6, 0:D]
    be2 = v_ref[7, 0:D]

    # --- QKV projection over all (s, b) rows at once ---
    qkv = jnp.dot(x, w_in, preferred_element_type=jnp.float32) + b_in
    q = qkv[:, :D]
    k = qkv[:, D:2 * D]
    v = qkv[:, 2 * D:]

    # Static same-batch additive mask: row i and j may attend iff i % B == j % B.
    row = lax.broadcasted_iota(jnp.int32, (R, R), 0)
    col = lax.broadcasted_iota(jnp.int32, (R, R), 1)
    mask_bias = jnp.where((row % B) == (col % B), 0.0, NEG)         # built once, added per head

    scale = 1.0 / math.sqrt(HD)
    dn = (((1,), (1,)), ((), ()))                                   # contract last dims (no .T)

    # --- multi-head self attention with fused output projection ---
    acc = jnp.zeros((R, D), jnp.float32)
    for h in range(NHEAD):                                          # static unroll over heads
        lo, hi = h * HD, (h + 1) * HD
        qh = q[:, lo:hi] * scale                                    # [R, HD]
        kh = k[:, lo:hi]
        vh = v[:, lo:hi]
        s = lax.dot_general(qh, kh, dn,
                            preferred_element_type=jnp.float32) + mask_bias   # [R, R]
        s = s - jnp.max(s, axis=-1, keepdims=True)
        p = jnp.exp(s)
        p = p * pl.reciprocal(jnp.sum(p, axis=-1, keepdims=True), approx=True)
        oh = jnp.dot(p, vh, preferred_element_type=jnp.float32)     # [R, HD]
        acc = acc + jnp.dot(oh, w_out[lo:hi, :],                     # fused out-proj
                            preferred_element_type=jnp.float32)
    attn = acc + b_out

    # --- residual + norm1 (dropout1 = identity) ---
    x1 = _layernorm(x + attn, g1, be1)

    # --- feed-forward (dropout = identity) ---
    hdn = jnp.maximum(
        jnp.dot(x1, w1, preferred_element_type=jnp.float32) + b1, 0.0)
    ff = jnp.dot(hdn, w2, preferred_element_type=jnp.float32) + b2

    # --- residual + norm2 (dropout2 = identity) ---
    x2 = _layernorm(x1 + ff, g2, be2)
    o_ref[...] = x2.astype(o_ref.dtype)


def _pack_params(params):
    """Pack all weights into one [WROWS, WLANES] slab and all 1-D params into [VROWS, WLANES]."""
    def pad_lanes(a):
        return jnp.pad(a, ((0, 0), (0, WLANES - a.shape[1])))

    def pad_vec(v):
        return jnp.pad(v, (0, WLANES - v.shape[0]))

    w = jnp.concatenate([
        pad_lanes(params["in_proj_weight"].T),       # rows   0: 32, lanes 0:96
        pad_lanes(params["out_proj_weight"].T),      # rows  32: 64, lanes 0:32
        pad_lanes(params["linear1_weight"].T),       # rows  64: 96, lanes 0:64
        pad_lanes(params["linear2_weight"].T),       # rows  96:160, lanes 0:32
    ], axis=0)                                       # [160, 96]

    vec = jnp.stack([
        pad_vec(params["in_proj_bias"]),             # row 0
        pad_vec(params["out_proj_bias"]),            # row 1
        pad_vec(params["norm1_weight"]),             # row 2
        pad_vec(params["norm1_bias"]),               # row 3
        pad_vec(params["linear1_bias"]),             # row 4
        pad_vec(params["linear2_bias"]),             # row 5
        pad_vec(params["norm2_weight"]),             # row 6
        pad_vec(params["norm2_bias"]),               # row 7
    ], axis=0)                                       # [8, 96]
    return w, vec


@jax.jit
def transformer_decoder_layer(tgt, params):
    """tgt: [S, B, D] float32 -> [S, B, D] float32 (tgt_mask=None)."""
    # Fold batch into rows: [S, B, D] -> [S*B, D]. Leading-dim merge, no transpose.
    x2d = tgt.reshape(R, D)
    w_packed, v_packed = _pack_params(params)

    # Single kernel invocation (no grid); every operand is a full VMEM block.
    vmem_spec = pl.BlockSpec(memory_space=pltpu.MemorySpace.VMEM)
    out2d = pl.pallas_call(
        decoder_layer_kernel,
        out_shape=jax.ShapeDtypeStruct((R, D), jnp.float32),
        in_specs=[vmem_spec, vmem_spec, vmem_spec],
        out_specs=vmem_spec,
    )(x2d, w_packed, v_packed)

    return out2d.reshape(S, B, D)                                   # free leading-dim split


# ---------------- pure-JAX reference (for correctness check) ----------------
def reference(tgt, p):
    x = tgt                                                         # [S, B, D]
    qkv = jnp.einsum('sbd,ed->sbe', x, p["in_proj_weight"]) + p["in_proj_bias"]
    q, k, v = jnp.split(qkv, 3, axis=-1)
    q = q.reshape(S, B, NHEAD, HD) / math.sqrt(HD)
    k = k.reshape(S, B, NHEAD, HD)
    v = v.reshape(S, B, NHEAD, HD)
    scores = jnp.einsum('sbhd,tbhd->bhst', q, k)
    attn = jax.nn.softmax(scores, axis=-1)
    out = jnp.einsum('bhst,tbhd->sbhd', attn, v).reshape(S, B, D)
    out = out @ p["out_proj_weight"].T + p["out_proj_bias"]
    x = _layernorm(x + out, p["norm1_weight"], p["norm1_bias"])
    h = jax.nn.relu(x @ p["linear1_weight"].T + p["linear1_bias"])
    ff = h @ p["linear2_weight"].T + p["linear2_bias"]
    x = _layernorm(x + ff, p["norm2_weight"], p["norm2_bias"])
    return x


def init_params(key):
    ks = jax.random.split(key, 8)
    sc = 0.05
    return {
        "in_proj_weight": sc * jax.random.normal(ks[0], (3 * D, D), jnp.float32),
        "in_proj_bias": sc * jax.random.normal(ks[1], (3 * D,), jnp.float32),
        "out_proj_weight": sc * jax.random.normal(ks[2], (D, D), jnp.float32),
        "out_proj_bias": sc * jax.random.normal(ks[3], (D,), jnp.float32),
        "linear1_weight": sc * jax.random.normal(ks[4], (FF, D), jnp.float32),
        "linear1_bias": sc * jax.random.normal(ks[5], (FF,), jnp.float32),
        "linear2_weight": sc * jax.random.normal(ks[6], (D, FF), jnp.float32),
        "linear2_bias": sc * jax.random.normal(ks[7], (D,), jnp.float32),
        "norm1_weight": jnp.ones((D,), jnp.float32),
        "norm1_bias": jnp.zeros((D,), jnp.float32),
        "norm2_weight": jnp.ones((D,), jnp.float32),
        "norm2_bias": jnp.zeros((D,), jnp.float32),
    }


if __name__ == "__main__":
    key = jax.random.PRNGKey(0)
    kx, kp = jax.random.split(key)
    tgt = jax.random.normal(kx, (S, B, D), jnp.float32)
    params = init_params(kp)

    # TODO(synk): attn_mask (tgt_mask) path not exercised; mask=None as in the default call.
    out = transformer_decoder_layer(tgt, params)
    out = jax.block_until_ready(out)

    ref = reference(tgt, params)
    assert out.shape == (S, B, D)
    # tolerance accounts for the EUP approximate-reciprocal softmax denominator
    assert jnp.allclose(out, ref, atol=1e-3, rtol=1e-3), \
        f"max err {jnp.max(jnp.abs(out - ref))}"
    print("KERNEL_OK")
</pallas_src>

<mosaic_0001>
module attributes {stable_mosaic.version = 11 : i64} {
  func.func @decoder_layer_kernel(%arg0: memref<16x32xf32, #tpu.memory_space<vmem>>, %arg1: memref<160x96xf32, #tpu.memory_space<vmem>>, %arg2: memref<8x96xf32, #tpu.memory_space<vmem>>, %arg3: memref<16x32xf32, #tpu.memory_space<vmem>>) attributes {dimension_semantics = [], scalar_prefetch = 0 : i64, scratch_operands = 0 : i64, tpu.core_type = #tpu.core_type<tc>} {
    %c0 = arith.constant 0 : index
    %c0_0 = arith.constant 0 : index
    %0 = vector.load %arg0[%c0, %c0_0] : memref<16x32xf32, #tpu.memory_space<vmem>>, vector<16x32xf32>
    %c0_1 = arith.constant 0 : index
    %c0_2 = arith.constant 0 : index
    %1 = vector.load %arg1[%c0_1, %c0_2] : memref<160x96xf32, #tpu.memory_space<vmem>>, vector<32x96xf32>
    %c32 = arith.constant 32 : index
    %c0_3 = arith.constant 0 : index
    %2 = vector.load %arg1[%c32, %c0_3] : memref<160x96xf32, #tpu.memory_space<vmem>>, vector<32x32xf32>
    %c64 = arith.constant 64 : index
    %c0_4 = arith.constant 0 : index
    %3 = vector.load %arg1[%c64, %c0_4] : memref<160x96xf32, #tpu.memory_space<vmem>>, vector<32x64xf32>
    %c96 = arith.constant 96 : index
    %c0_5 = arith.constant 0 : index
    %4 = vector.load %arg1[%c96, %c0_5] : memref<160x96xf32, #tpu.memory_space<vmem>>, vector<64x32xf32>
    %c0_6 = arith.constant 0 : index
    %c0_7 = arith.constant 0 : index
    %5 = vector.load %arg2[%c0_6, %c0_7] : memref<8x96xf32, #tpu.memory_space<vmem>>, vector<1x96xf32>
    %6 = vector.shape_cast %5 : vector<1x96xf32> to vector<96xf32>
    %c1 = arith.constant 1 : index
    %c0_8 = arith.constant 0 : index
    %7 = vector.load %arg2[%c1, %c0_8] : memref<8x96xf32, #tpu.memory_space<vmem>>, vector<1x32xf32>
    %8 = vector.shape_cast %7 : vector<1x32xf32> to vector<32xf32>
    %c2 = arith.constant 2 : index
    %c0_9 = arith.constant 0 : index
    %9 = vector.load %arg2[%c2, %c0_9] : memref<8x96xf32, #tpu.memory_space<vmem>>, vector<1x32xf32>
    %10 = vector.shape_cast %9 : vector<1x32xf32> to vector<32xf32>
    %c3 = arith.constant 3 : index
    %c0_10 = arith.constant 0 : index
    %11 = vector.load %arg2[%c3, %c0_10] : memref<8x96xf32, #tpu.memory_space<vmem>>, vector<1x32xf32>
    %12 = vector.shape_cast %11 : vector<1x32xf32> to vector<32xf32>
    %c4 = arith.constant 4 : index
    %c0_11 = arith.constant 0 : index
    %13 = vector.load %arg2[%c4, %c0_11] : memref<8x96xf32, #tpu.memory_space<vmem>>, vector<1x64xf32>
    %14 = vector.shape_cast %13 : vector<1x64xf32> to vector<64xf32>
    %c5 = arith.constant 5 : index
    %c0_12 = arith.constant 0 : index
    %15 = vector.load %arg2[%c5, %c0_12] : memref<8x96xf32, #tpu.memory_space<vmem>>, vector<1x32xf32>
    %16 = vector.shape_cast %15 : vector<1x32xf32> to vector<32xf32>
    %c6 = arith.constant 6 : index
    %c0_13 = arith.constant 0 : index
    %17 = vector.load %arg2[%c6, %c0_13] : memref<8x96xf32, #tpu.memory_space<vmem>>, vector<1x32xf32>
    %18 = vector.shape_cast %17 : vector<1x32xf32> to vector<32xf32>
    %c7 = arith.constant 7 : index
    %c0_14 = arith.constant 0 : index
    %19 = vector.load %arg2[%c7, %c0_14] : memref<8x96xf32, #tpu.memory_space<vmem>>, vector<1x32xf32>
    %20 = vector.shape_cast %19 : vector<1x32xf32> to vector<32xf32>
    %cst = arith.constant dense<0.000000e+00> : vector<16x96xf32>
    %21 = tpu.matmul %0, %1, %cst {dimension_numbers = #tpu.dot_dimension_numbers<[1], [0], [0], [1], [0, 0, 1, 1], [], []>} : vector<16x32xf32>, vector<32x96xf32>, vector<16x96xf32> -> vector<16x96xf32>
    %22 = vector.shape_cast %6 : vector<96xf32> to vector<1x96xf32>
    %23 = vector.broadcast %22 : vector<1x96xf32> to vector<16x96xf32>
    %24 = arith.addf %21, %23 : vector<16x96xf32>
    %25 = vector.extract_strided_slice %24 {offsets = [0, 0], sizes = [16, 32], strides = [1, 1]} : vector<16x96xf32> to vector<16x32xf32>
    %26 = vector.extract_strided_slice %24 {offsets = [0, 32], sizes = [16, 32], strides = [1, 1]} : vector<16x96xf32> to vector<16x32xf32>
    %27 = vector.extract_strided_slice %24 {offsets = [0, 64], sizes = [16, 32], strides = [1, 1]} : vector<16x96xf32> to vector<16x32xf32>
    %28 = tpu.iota {dimensions = array<i32: 0>} : vector<16x16xi32>
    %29 = tpu.iota {dimensions = array<i32: 1>} : vector<16x16xi32>
    %c2_i32 = arith.constant 2 : i32
    %c0_i32 = arith.constant 0 : i32
    %30 = arith.cmpi eq, %c2_i32, %c0_i32 : i32
    %c1_i32 = arith.constant 1 : i32
    %31 = arith.select %30, %c1_i32, %c2_i32 : i32
    %32 = vector.broadcast %31 : i32 to vector<16x16xi32>
    %33 = arith.remsi %28, %32 : vector<16x16xi32>
    %c0_i32_15 = arith.constant 0 : i32
    %34 = vector.broadcast %c0_i32_15 : i32 to vector<16x16xi32>
    %35 = arith.cmpi ne, %33, %34 : vector<16x16xi32>
    %c0_i32_16 = arith.constant 0 : i32
    %36 = vector.broadcast %c0_i32_16 : i32 to vector<16x16xi32>
    %37 = arith.cmpi slt, %33, %36 : vector<16x16xi32>
    %c0_i32_17 = arith.constant 0 : i32
    %38 = arith.cmpi slt, %31, %c0_i32_17 : i32
    %39 = vector.broadcast %38 : i1 to vector<16x16xi1>
    %40 = vector.broadcast %39 : vector<16x16xi1> to vector<16x16xi1>
    %41 = arith.xori %37, %40 : vector<16x16xi1>
    %42 = arith.andi %41, %35 : vector<16x16xi1>
    %43 = vector.broadcast %31 : i32 to vector<16x16xi32>
    %44 = arith.addi %33, %43 : vector<16x16xi32>
    %45 = arith.select %42, %44, %33 : vector<16x16xi1>, vector<16x16xi32>
    %c2_i32_18 = arith.constant 2 : i32
    %c0_i32_19 = arith.constant 0 : i32
    %46 = arith.cmpi eq, %c2_i32_18, %c0_i32_19 : i32
    %c1_i32_20 = arith.constant 1 : i32
    %47 = arith.select %46, %c1_i32_20, %c2_i32_18 : i32
    %48 = vector.broadcast %47 : i32 to vector<16x16xi32>
    %49 = arith.remsi %29, %48 : vector<16x16xi32>
    %c0_i32_21 = arith.constant 0 : i32
    %50 = vector.broadcast %c0_i32_21 : i32 to vector<16x16xi32>
    %51 = arith.cmpi ne, %49, %50 : vector<16x16xi32>
    %c0_i32_22 = arith.constant 0 : i32
    %52 = vector.broadcast %c0_i32_22 : i32 to vector<16x16xi32>
    %53 = arith.cmpi slt, %49, %52 : vector<16x16xi32>
    %c0_i32_23 = arith.constant 0 : i32
    %54 = arith.cmpi slt, %47, %c0_i32_23 : i32
    %55 = vector.broadcast %54 : i1 to vector<16x16xi1>
    %56 = vector.broadcast %55 : vector<16x16xi1> to vector<16x16xi1>
    %57 = arith.xori %53, %56 : vector<16x16xi1>
    %58 = arith.andi %57, %51 : vector<16x16xi1>
    %59 = vector.broadcast %47 : i32 to vector<16x16xi32>
    %60 = arith.addi %49, %59 : vector<16x16xi32>
    %61 = arith.select %58, %60, %49 : vector<16x16xi1>, vector<16x16xi32>
    %62 = arith.cmpi eq, %45, %61 : vector<16x16xi32>
    %cst_24 = arith.constant 0.000000e+00 : f32
    %cst_25 = arith.constant -1.000000e+30 : f32
    %63 = vector.broadcast %cst_24 : f32 to vector<16x16xf32>
    %64 = vector.broadcast %cst_25 : f32 to vector<16x16xf32>
    %65 = arith.select %62, %63, %64 : vector<16x16xi1>, vector<16x16xf32>
    %cst_26 = arith.constant 0.000000e+00 : f32
    %66 = vector.broadcast %cst_26 : f32 to vector<16x32xf32>
    %67 = vector.extract_strided_slice %25 {offsets = [0, 0], sizes = [16, 8], strides = [1, 1]} : vector<16x32xf32> to vector<16x8xf32>
    %cst_27 = arith.constant 0.353553385 : f32
    %68 = vector.broadcast %cst_27 : f32 to vector<16x8xf32>
    %69 = arith.mulf %67, %68 : vector<16x8xf32>
    %70 = vector.extract_strided_slice %26 {offsets = [0, 0], sizes = [16, 8], strides = [1, 1]} : vector<16x32xf32> to vector<16x8xf32>
    %71 = vector.extract_strided_slice %27 {offsets = [0, 0], sizes = [16, 8], strides = [1, 1]} : vector<16x32xf32> to vector<16x8xf32>
    %cst_28 = arith.constant dense<0.000000e+00> : vector<16x16xf32>
    %72 = tpu.matmul %69, %70, %cst_28 {dimension_numbers = #tpu.dot_dimension_numbers<[1], [1], [0], [0], [0, 0, 1, 0], [], []>} : vector<16x8xf32>, vector<16x8xf32>, vector<16x16xf32> -> vector<16x16xf32>
    %73 = arith.addf %72, %65 : vector<16x16xf32>
    %cst_29 = arith.constant dense<0xFF800000> : vector<16xf32>
    %74 = vector.multi_reduction <maximumf>, %73, %cst_29 [1] : vector<16x16xf32> to vector<16xf32>
    %75 = vector.shape_cast %74 : vector<16xf32> to vector<16x1xf32>
    %76 = vector.broadcast %75 : vector<16x1xf32> to vector<16x16xf32>
    %77 = arith.subf %73, %76 : vector<16x16xf32>
    %78 = math.exp %77 : vector<16x16xf32>
    %cst_30 = arith.constant dense<0.000000e+00> : vector<16xf32>
    %79 = vector.multi_reduction <add>, %78, %cst_30 [1] : vector<16x16xf32> to vector<16xf32>
    %80 = vector.shape_cast %79 : vector<16xf32> to vector<16x1xf32>
    %81 = tpu.reciprocal %80 {approx = true} : vector<16x1xf32> -> vector<16x1xf32>
    %82 = vector.broadcast %81 : vector<16x1xf32> to vector<16x16xf32>
    %83 = arith.mulf %78, %82 : vector<16x16xf32>
    %cst_31 = arith.constant dense<0.000000e+00> : vector<16x8xf32>
    %84 = tpu.matmul %83, %71, %cst_31 {dimension_numbers = #tpu.dot_dimension_numbers<[1], [0], [0], [1], [0, 0, 1, 1], [], []>} : vector<16x16xf32>, vector<16x8xf32>, vector<16x8xf32> -> vector<16x8xf32>
    %85 = vector.extract_strided_slice %2 {offsets = [0, 0], sizes = [8, 32], strides = [1, 1]} : vector<32x32xf32> to vector<8x32xf32>
    %cst_32 = arith.constant dense<0.000000e+00> : vector<16x32xf32>
    %86 = tpu.matmul %84, %85, %cst_32 {dimension_numbers = #tpu.dot_dimension_numbers<[1], [0], [0], [1], [0, 0, 1, 1], [], []>} : vector<16x8xf32>, vector<8x32xf32>, vector<16x32xf32> -> vector<16x32xf32>
    %87 = arith.addf %66, %86 : vector<16x32xf32>
    %88 = vector.extract_strided_slice %25 {offsets = [0, 8], sizes = [16, 8], strides = [1, 1]} : vector<16x32xf32> to vector<16x8xf32>
    %cst_33 = arith.constant 0.353553385 : f32
    %89 = vector.broadcast %cst_33 : f32 to vector<16x8xf32>
    %90 = arith.mulf %88, %89 : vector<16x8xf32>
    %91 = vector.extract_strided_slice %26 {offsets = [0, 8], sizes = [16, 8], strides = [1, 1]} : vector<16x32xf32> to vector<16x8xf32>
    %92 = vector.extract_strided_slice %27 {offsets = [0, 8], sizes = [16, 8], strides = [1, 1]} : vector<16x32xf32> to vector<16x8xf32>
    %cst_34 = arith.constant dense<0.000000e+00> : vector<16x16xf32>
    %93 = tpu.matmul %90, %91, %cst_34 {dimension_numbers = #tpu.dot_dimension_numbers<[1], [1], [0], [0], [0, 0, 1, 0], [], []>} : vector<16x8xf32>, vector<16x8xf32>, vector<16x16xf32> -> vector<16x16xf32>
    %94 = arith.addf %93, %65 : vector<16x16xf32>
    %cst_35 = arith.constant dense<0xFF800000> : vector<16xf32>
    %95 = vector.multi_reduction <maximumf>, %94, %cst_35 [1] : vector<16x16xf32> to vector<16xf32>
    %96 = vector.shape_cast %95 : vector<16xf32> to vector<16x1xf32>
    %97 = vector.broadcast %96 : vector<16x1xf32> to vector<16x16xf32>
    %98 = arith.subf %94, %97 : vector<16x16xf32>
    %99 = math.exp %98 : vector<16x16xf32>
    %cst_36 = arith.constant dense<0.000000e+00> : vector<16xf32>
    %100 = vector.multi_reduction <add>, %99, %cst_36 [1] : vector<16x16xf32> to vector<16xf32>
    %101 = vector.shape_cast %100 : vector<16xf32> to vector<16x1xf32>
    %102 = tpu.reciprocal %101 {approx = true} : vector<16x1xf32> -> vector<16x1xf32>
    %103 = vector.broadcast %102 : vector<16x1xf32> to vector<16x16xf32>
    %104 = arith.mulf %99, %103 : vector<16x16xf32>
    %cst_37 = arith.constant dense<0.000000e+00> : vector<16x8xf32>
    %105 = tpu.matmul %104, %92, %cst_37 {dimension_numbers = #tpu.dot_dimension_numbers<[1], [0], [0], [1], [0, 0, 1, 1], [], []>} : vector<16x16xf32>, vector<16x8xf32>, vector<16x8xf32> -> vector<16x8xf32>
    %106 = vector.extract_strided_slice %2 {offsets = [8, 0], sizes = [8, 32], strides = [1, 1]} : vector<32x32xf32> to vector<8x32xf32>
    %cst_38 = arith.constant dense<0.000000e+00> : vector<16x32xf32>
    %107 = tpu.matmul %105, %106, %cst_38 {dimension_numbers = #tpu.dot_dimension_numbers<[1], [0], [0], [1], [0, 0, 1, 1], [], []>} : vector<16x8xf32>, vector<8x32xf32>, vector<16x32xf32> -> vector<16x32xf32>
    %108 = arith.addf %87, %107 : vector<16x32xf32>
    %109 = vector.extract_strided_slice %25 {offsets = [0, 16], sizes = [16, 8], strides = [1, 1]} : vector<16x32xf32> to vector<16x8xf32>
    %cst_39 = arith.constant 0.353553385 : f32
    %110 = vector.broadcast %cst_39 : f32 to vector<16x8xf32>
    %111 = arith.mulf %109, %110 : vector<16x8xf32>
    %112 = vector.extract_strided_slice %26 {offsets = [0, 16], sizes = [16, 8], strides = [1, 1]} : vector<16x32xf32> to vector<16x8xf32>
    %113 = vector.extract_strided_slice %27 {offsets = [0, 16], sizes = [16, 8], strides = [1, 1]} : vector<16x32xf32> to vector<16x8xf32>
    %cst_40 = arith.constant dense<0.000000e+00> : vector<16x16xf32>
    %114 = tpu.matmul %111, %112, %cst_40 {dimension_numbers = #tpu.dot_dimension_numbers<[1], [1], [0], [0], [0, 0, 1, 0], [], []>} : vector<16x8xf32>, vector<16x8xf32>, vector<16x16xf32> -> vector<16x16xf32>
    %115 = arith.addf %114, %65 : vector<16x16xf32>
    %cst_41 = arith.constant dense<0xFF800000> : vector<16xf32>
    %116 = vector.multi_reduction <maximumf>, %115, %cst_41 [1] : vector<16x16xf32> to vector<16xf32>
    %117 = vector.shape_cast %116 : vector<16xf32> to vector<16x1xf32>
    %118 = vector.broadcast %117 : vector<16x1xf32> to vector<16x16xf32>
    %119 = arith.subf %115, %118 : vector<16x16xf32>
    %120 = math.exp %119 : vector<16x16xf32>
    %cst_42 = arith.constant dense<0.000000e+00> : vector<16xf32>
    %121 = vector.multi_reduction <add>, %120, %cst_42 [1] : vector<16x16xf32> to vector<16xf32>
    %122 = vector.shape_cast %121 : vector<16xf32> to vector<16x1xf32>
    %123 = tpu.reciprocal %122 {approx = true} : vector<16x1xf32> -> vector<16x1xf32>
    %124 = vector.broadcast %123 : vector<16x1xf32> to vector<16x16xf32>
    %125 = arith.mulf %120, %124 : vector<16x16xf32>
    %cst_43 = arith.constant dense<0.000000e+00> : vector<16x8xf32>
    %126 = tpu.matmul %125, %113, %cst_43 {dimension_numbers = #tpu.dot_dimension_numbers<[1], [0], [0], [1], [0, 0, 1, 1], [], []>} : vector<16x16xf32>, vector<16x8xf32>, vector<16x8xf32> -> vector<16x8xf32>
    %127 = vector.extract_strided_slice %2 {offsets = [16, 0], sizes = [8, 32], strides = [1, 1]} : vector<32x32xf32> to vector<8x32xf32>
    %cst_44 = arith.constant dense<0.000000e+00> : vector<16x32xf32>
    %128 = tpu.matmul %126, %127, %cst_44 {dimension_numbers = #tpu.dot_dimension_numbers<[1], [0], [0], [1], [0, 0, 1, 1], [], []>} : vector<16x8xf32>, vector<8x32xf32>, vector<16x32xf32> -> vector<16x32xf32>
    %129 = arith.addf %108, %128 : vector<16x32xf32>
    %130 = vector.extract_strided_slice %25 {offsets = [0, 24], sizes = [16, 8], strides = [1, 1]} : vector<16x32xf32> to vector<16x8xf32>
    %cst_45 = arith.constant 0.353553385 : f32
    %131 = vector.broadcast %cst_45 : f32 to vector<16x8xf32>
    %132 = arith.mulf %130, %131 : vector<16x8xf32>
    %133 = vector.extract_strided_slice %26 {offsets = [0, 24], sizes = [16, 8], strides = [1, 1]} : vector<16x32xf32> to vector<16x8xf32>
    %134 = vector.extract_strided_slice %27 {offsets = [0, 24], sizes = [16, 8], strides = [1, 1]} : vector<16x32xf32> to vector<16x8xf32>
    %cst_46 = arith.constant dense<0.000000e+00> : vector<16x16xf32>
    %135 = tpu.matmul %132, %133, %cst_46 {dimension_numbers = #tpu.dot_dimension_numbers<[1], [1], [0], [0], [0, 0, 1, 0], [], []>} : vector<16x8xf32>, vector<16x8xf32>, vector<16x16xf32> -> vector<16x16xf32>
    %136 = arith.addf %135, %65 : vector<16x16xf32>
    %cst_47 = arith.constant dense<0xFF800000> : vector<16xf32>
    %137 = vector.multi_reduction <maximumf>, %136, %cst_47 [1] : vector<16x16xf32> to vector<16xf32>
    %138 = vector.shape_cast %137 : vector<16xf32> to vector<16x1xf32>
    %139 = vector.broadcast %138 : vector<16x1xf32> to vector<16x16xf32>
    %140 = arith.subf %136, %139 : vector<16x16xf32>
    %141 = math.exp %140 : vector<16x16xf32>
    %cst_48 = arith.constant dense<0.000000e+00> : vector<16xf32>
    %142 = vector.multi_reduction <add>, %141, %cst_48 [1] : vector<16x16xf32> to vector<16xf32>
    %143 = vector.shape_cast %142 : vector<16xf32> to vector<16x1xf32>
    %144 = tpu.reciprocal %143 {approx = true} : vector<16x1xf32> -> vector<16x1xf32>
    %145 = vector.broadcast %144 : vector<16x1xf32> to vector<16x16xf32>
    %146 = arith.mulf %141, %145 : vector<16x16xf32>
    %cst_49 = arith.constant dense<0.000000e+00> : vector<16x8xf32>
    %147 = tpu.matmul %146, %134, %cst_49 {dimension_numbers = #tpu.dot_dimension_numbers<[1], [0], [0], [1], [0, 0, 1, 1], [], []>} : vector<16x16xf32>, vector<16x8xf32>, vector<16x8xf32> -> vector<16x8xf32>
    %148 = vector.extract_strided_slice %2 {offsets = [24, 0], sizes = [8, 32], strides = [1, 1]} : vector<32x32xf32> to vector<8x32xf32>
    %cst_50 = arith.constant dense<0.000000e+00> : vector<16x32xf32>
    %149 = tpu.matmul %147, %148, %cst_50 {dimension_numbers = #tpu.dot_dimension_numbers<[1], [0], [0], [1], [0, 0, 1, 1], [], []>} : vector<16x8xf32>, vector<8x32xf32>, vector<16x32xf32> -> vector<16x32xf32>
    %150 = arith.addf %129, %149 : vector<16x32xf32>
    %151 = vector.shape_cast %8 : vector<32xf32> to vector<1x32xf32>
    %152 = vector.broadcast %151 : vector<1x32xf32> to vector<16x32xf32>
    %153 = arith.addf %150, %152 : vector<16x32xf32>
    %154 = arith.addf %0, %153 : vector<16x32xf32>
    %cst_51 = arith.constant dense<0.000000e+00> : vector<16xf32>
    %155 = vector.multi_reduction <add>, %154, %cst_51 [1] : vector<16x32xf32> to vector<16xf32>
    %156 = vector.shape_cast %155 : vector<16xf32> to vector<16x1xf32>
    %cst_52 = arith.constant 3.200000e+01 : f32
    %157 = vector.broadcast %cst_52 : f32 to vector<16x1xf32>
    %158 = arith.divf %156, %157 : vector<16x1xf32>
    %159 = vector.broadcast %158 : vector<16x1xf32> to vector<16x32xf32>
    %160 = arith.subf %154, %159 : vector<16x32xf32>
    %161 = arith.mulf %160, %160 : vector<16x32xf32>
    %cst_53 = arith.constant dense<0.000000e+00> : vector<16xf32>
    %162 = vector.multi_reduction <add>, %161, %cst_53 [1] : vector<16x32xf32> to vector<16xf32>
    %163 = vector.shape_cast %162 : vector<16xf32> to vector<16x1xf32>
    %cst_54 = arith.constant 3.200000e+01 : f32
    %164 = vector.broadcast %cst_54 : f32 to vector<16x1xf32>
    %165 = arith.divf %163, %164 : vector<16x1xf32>
    %166 = vector.broadcast %158 : vector<16x1xf32> to vector<16x32xf32>
    %167 = arith.subf %154, %166 : vector<16x32xf32>
    %cst_55 = arith.constant 9.99999974E-6 : f32
    %168 = vector.broadcast %cst_55 : f32 to vector<16x1xf32>
    %169 = arith.addf %165, %168 : vector<16x1xf32>
    %170 = math.rsqrt %169 : vector<16x1xf32>
    %171 = vector.broadcast %170 : vector<16x1xf32> to vector<16x32xf32>
    %172 = arith.mulf %167, %171 : vector<16x32xf32>
    %173 = vector.shape_cast %10 : vector<32xf32> to vector<1x32xf32>
    %174 = vector.broadcast %173 : vector<1x32xf32> to vector<16x32xf32>
    %175 = arith.mulf %172, %174 : vector<16x32xf32>
    %176 = vector.shape_cast %12 : vector<32xf32> to vector<1x32xf32>
    %177 = vector.broadcast %176 : vector<1x32xf32> to vector<16x32xf32>
    %178 = arith.addf %175, %177 : vector<16x32xf32>
    %cst_56 = arith.constant dense<0.000000e+00> : vector<16x64xf32>
    %179 = tpu.matmul %178, %3, %cst_56 {dimension_numbers = #tpu.dot_dimension_numbers<[1], [0], [0], [1], [0, 0, 1, 1], [], []>} : vector<16x32xf32>, vector<32x64xf32>, vector<16x64xf32> -> vector<16x64xf32>
    %180 = vector.shape_cast %14 : vector<64xf32> to vector<1x64xf32>
    %181 = vector.broadcast %180 : vector<1x64xf32> to vector<16x64xf32>
    %182 = arith.addf %179, %181 : vector<16x64xf32>
    %cst_57 = arith.constant 0.000000e+00 : f32
    %183 = vector.broadcast %cst_57 : f32 to vector<16x64xf32>
    %184 = arith.maximumf %182, %183 : vector<16x64xf32>
    %cst_58 = arith.constant dense<0.000000e+00> : vector<16x32xf32>
    %185 = tpu.matmul %184, %4, %cst_58 {dimension_numbers = #tpu.dot_dimension_numbers<[1], [0], [0], [1], [0, 0, 1, 1], [], []>} : vector<16x64xf32>, vector<64x32xf32>, vector<16x32xf32> -> vector<16x32xf32>
    %186 = vector.shape_cast %16 : vector<32xf32> to vector<1x32xf32>
    %187 = vector.broadcast %186 : vector<1x32xf32> to vector<16x32xf32>
    %188 = arith.addf %185, %187 : vector<16x32xf32>
    %189 = arith.addf %178, %188 : vector<16x32xf32>
    %cst_59 = arith.constant dense<0.000000e+00> : vector<16xf32>
    %190 = vector.multi_reduction <add>, %189, %cst_59 [1] : vector<16x32xf32> to vector<16xf32>
    %191 = vector.shape_cast %190 : vector<16xf32> to vector<16x1xf32>
    %cst_60 = arith.constant 3.200000e+01 : f32
    %192 = vector.broadcast %cst_60 : f32 to vector<16x1xf32>
    %193 = arith.divf %191, %192 : vector<16x1xf32>
    %194 = vector.broadcast %193 : vector<16x1xf32> to vector<16x32xf32>
    %195 = arith.subf %189, %194 : vector<16x32xf32>
    %196 = arith.mulf %195, %195 : vector<16x32xf32>
    %cst_61 = arith.constant dense<0.000000e+00> : vector<16xf32>
    %197 = vector.multi_reduction <add>, %196, %cst_61 [1] : vector<16x32xf32> to vector<16xf32>
    %198 = vector.shape_cast %197 : vector<16xf32> to vector<16x1xf32>
    %cst_62 = arith.constant 3.200000e+01 : f32
    %199 = vector.broadcast %cst_62 : f32 to vector<16x1xf32>
    %200 = arith.divf %198, %199 : vector<16x1xf32>
    %201 = vector.broadcast %193 : vector<16x1xf32> to vector<16x32xf32>
    %202 = arith.subf %189, %201 : vector<16x32xf32>
    %cst_63 = arith.constant 9.99999974E-6 : f32
    %203 = vector.broadcast %cst_63 : f32 to vector<16x1xf32>
    %204 = arith.addf %200, %203 : vector<16x1xf32>
    %205 = math.rsqrt %204 : vector<16x1xf32>
    %206 = vector.broadcast %205 : vector<16x1xf32> to vector<16x32xf32>
    %207 = arith.mulf %202, %206 : vector<16x32xf32>
    %208 = vector.shape_cast %18 : vector<32xf32> to vector<1x32xf32>
    %209 = vector.broadcast %208 : vector<1x32xf32> to vector<16x32xf32>
    %210 = arith.mulf %207, %209 : vector<16x32xf32>
    %211 = vector.shape_cast %20 : vector<32xf32> to vector<1x32xf32>
    %212 = vector.broadcast %211 : vector<1x32xf32> to vector<16x32xf32>
    %213 = arith.addf %210, %212 : vector<16x32xf32>
    %c0_64 = arith.constant 0 : index
    %c0_65 = arith.constant 0 : index
    %214 = vector.load %arg3[%c0_64, %c0_65] : memref<16x32xf32, #tpu.memory_space<vmem>>, vector<16x32xf32>
    tpu.vector_store %arg3[%c0_64, %c0_65], %213 {strides = array<i32>} : memref<16x32xf32, #tpu.memory_space<vmem>>, vector<16x32xf32>,
    return
  }
}

</mosaic_0001>

<llo_original>
// kernel: transformer_decoder_layer.1
$region0: #{transformer_decoder_layer.1}
  #allocation0 [shape = 'u32[]', space=smem, size = 0x4, offset = 0x4, fixed_abs, tag = 'smem constant byte address 0x4 - core index']
  #allocation1 [shape = 'u32[144,128]{1,0:T(1,128)}', space=vmem, size = 0x12000, scoped, tag = 'internal scratch']
  %s0 = inlined_call_operand.vmem [shape: f32[16,32], index: 0, kind: input, shape index: {}]
  %s1 = inlined_call_operand.vmem [shape: f32[160,96], index: 1, kind: input, shape index: {}]
  %s2 = inlined_call_operand.vmem [shape: f32[8,96], index: 2, kind: input, shape index: {}]
  %s3 = inlined_call_operand.hbm [shape: f32[16,32], index: 3, kind: output, shape index: {}]
  %s4 = sld [smem:[#allocation0]]
  $region22: #{transformer_decoder_layer.1} parent=0
    _
  %s6 = ssub.s32 1, %s4
  %s7 = scalar_select 0, %s6, %s4
  $region1: #{transformer_decoder_layer.1} parent=0
    #allocation2 [shape = 'u8[8192]{0}', space=vmem, size = 0x2000, scoped, tag = 'output window, operand 0, single buffered']
    #allocation3 [shape = 's32[1]{0}', space=sflag, size = 0x4, scoped, tag = 'scoped memory for transformer_decoder_layer.1']
    %8 = vsyncpa [#allocation3], 0
    // Predicated region
    $region2: #{transformer_decoder_layer.1} parent=1 // pred_check
      _
    $region3: #{transformer_decoder_layer.1} parent=1 // pred_check_branch
      %10 = sbr.rel (0) target = $region5
    $region4: #{transformer_decoder_layer.1} parent=1 // pred_region
      _
    $region5: #{transformer_decoder_layer.1} parent=1 // pred_fallthru
      _
    // Predicated region
    $region6: #{transformer_decoder_layer.1} parent=1 // pred_check
      _
    $region7: #{transformer_decoder_layer.1} parent=1 // pred_check_branch
      %12 = sbr.rel (0) target = $region9
    $region8: #{transformer_decoder_layer.1} parent=1 // pred_region
      _
    $region9: #{transformer_decoder_layer.1} parent=1 // pred_fallthru
      _
    // Predicated region
    $region10: #{transformer_decoder_layer.1} parent=1 // pred_check
      _
    $region11: #{transformer_decoder_layer.1} parent=1 // pred_check_branch
      %14 = sbr.rel (0) target = $region13
    $region12: #{transformer_decoder_layer.1} parent=1 // pred_region
      _
    $region13: #{transformer_decoder_layer.1} parent=1 // pred_fallthru
      _
    %v15 = vld [vmem:[%s0] sm:$0xff]
    %v16 = vld [vmem:[%s0 + $0x8] sm:$0xff]
    %v17 = vld [vmem:[%s1] sm:$0xff]
    %v18 = vld [vmem:[%s1 + $0x8] sm:$0xff]
    %v19 = vld [vmem:[%s1 + $0x10] sm:$0xff]
    %v20 = vld [vmem:[%s1 + $0x18] sm:$0xff]
    %v21 = vld [vmem:[%s1 + $0x20] sm:$0xff]
    %v22 = vld [vmem:[%s1 + $0x28] sm:$0xff]
    %v23 = vld [vmem:[%s1 + $0x30] sm:$0xff]
    %v24 = vld [vmem:[%s1 + $0x38] sm:$0xff]
    %v25 = vld [vmem:[%s1 + $0x40] sm:$0xff]
    %v26 = vld [vmem:[%s1 + $0x48] sm:$0xff]
    %v27 = vld [vmem:[%s1 + $0x50] sm:$0xff]
    %v28 = vld [vmem:[%s1 + $0x58] sm:$0xff]
    %v29 = vld [vmem:[%s1 + $0x60] sm:$0xff]
    %v30 = vld [vmem:[%s1 + $0x68] sm:$0xff]
    %v31 = vld [vmem:[%s1 + $0x70] sm:$0xff]
    %v32 = vld [vmem:[%s1 + $0x78] sm:$0xff]
    %v33 = vld [vmem:[%s1 + $0x80] sm:$0xff]
    %v34 = vld [vmem:[%s1 + $0x88] sm:$0xff]
    %v35 = vld [vmem:[%s1 + $0x90] sm:$0xff]
    %v36 = vld [vmem:[%s1 + $0x98] sm:$0xff]
    %v37 = vld [vmem:[%s2] sm:$0x1]
    %v38 = vld [vmem:[%s2 + $0x1] sm:$0x1]
    %v39 = vld [vmem:[%s2 + $0x2] sm:$0x1]
    %v40 = vld [vmem:[%s2 + $0x3] sm:$0x1]
    %v41 = vld [vmem:[%s2 + $0x4] sm:$0x1]
    %v42 = vld [vmem:[%s2 + $0x5] sm:$0x1]
    %v43 = vld [vmem:[%s2 + $0x6] sm:$0x1]
    %v44 = vld [vmem:[%s2 + $0x7] sm:$0x1]
    %v45 = vlaneseq
    %v46 = vshrl.u32 %v45, 7
    %v47 = vsub.s32 0, %v46
    %v48 = vrot.slane %v37, %v47
    %vm49 = vcmask 261120
    %v51 = vsel %vm49, %v15, 0
    %v54 = vsel %vm49, %v16, 0
    %56 = vmatprep.subr.mxu0 0.0
    %57 = vmatpush1.msra.mxu0 %v17
    %58 = vmatprep.subr.mxu0 0.0
    %59 = vmatpush1.msra.mxu0 %v18
    %60 = vmatprep.subr.mxu0 0.0
    %61 = vmatpush1.msra.mxu0 %v19
    %62 = vmatprep.subr.mxu0 0.0
    %63 = vmatpush1.msra.mxu0 %v20
    %64 = vmatprep.subr.mxu0 0.0
    %65 = vmatpush1.msra.mxu0 0.0
    %66 = vmatprep.subr.mxu0 0.0
    %67 = vmatpush1.msra.mxu0 0.0
    %68 = vmatprep.subr.mxu0 0.0
    %69 = vmatpush1.msra.mxu0 0.0
    %70 = vmatprep.subr.mxu0 0.0
    %71 = vmatpush1.msra.mxu0 0.0
    %72 = vmatprep.subr.mxu0 0.0
    %73 = vmatpush1.msra.mxu0 0.0
    %74 = vmatprep.subr.mxu0 0.0
    %75 = vmatpush1.msra.mxu0 0.0
    %76 = vmatprep.subr.mxu0 0.0
    %77 = vmatpush1.msra.mxu0 0.0
    %78 = vmatprep.subr.mxu0 0.0
    %79 = vmatpush1.msra.mxu0 0.0
    %80 = vmatprep.subr.mxu0 0.0
    %81 = vmatpush1.msra.mxu0 0.0
    %82 = vmatprep.subr.mxu0 0.0
    %83 = vmatpush1.msra.mxu0 0.0
    %84 = vmatprep.subr.mxu0 0.0
    %85 = vmatpush1.msra.mxu0 0.0
    %86 = vmatprep.subr.mxu0 0.0
    %87 = vmatpush1.msra.mxu0 0.0
    %88 = vmatprep.subr.mxu0 0.0
    %89 = vmatpush1.msra.mxu0 0.0
    %90 = vmatprep.subr.mxu0 0.0
    %91 = vmatpush1.msra.mxu0 0.0
    %92 = vmatprep.subr.mxu0 0.0
    %93 = vmatpush1.msra.mxu0 0.0
    %94 = vmatprep.subr.mxu0 0.0
    %95 = vmatpush1.msra.mxu0 0.0
    %96 = vmatprep.subr.mxu0 0.0
    %97 = vmatpush1.msra.mxu0 0.0
    %98 = vmatprep.subr.mxu0 0.0
    %99 = vmatpush1.msra.mxu0 0.0
    %100 = vmatprep.subr.mxu0 0.0
    %101 = vmatpush1.msra.mxu0 0.0
    %102 = vmatprep.subr.mxu0 0.0
    %103 = vmatpush1.msra.mxu0 0.0
    %104 = vmatprep.subr.mxu0 0.0
    %105 = vmatpush1.msra.mxu0 0.0
    %106 = vmatprep.subr.mxu0 0.0
    %107 = vmatpush1.msra.mxu0 0.0
    %108 = vmatprep.subr.mxu0 0.0
    %109 = vmatpush1.msra.mxu0 0.0
    %110 = vmatprep.subr.mxu0 0.0
    %111 = vmatpush1.msra.mxu0 0.0
    %112 = vmatprep.subr.mxu0 0.0
    %113 = vmatpush1.msra.mxu0 0.0
    %114 = vmatprep.subr.mxu0 0.0
    %115 = vmatpush1.msra.mxu0 0.0
    %116 = vmatprep.subr.mxu0 0.0
    %117 = vmatpush1.msra.mxu0 0.0
    %118 = vmatprep.subr.mxu0 0.0
    %119 = vmatpush1.msra.mxu0 0.0
    %120 = vmatprep.mubr.f32.mxu0 0.0
    %121 = vmatmul.mubr.f32.gmra.mrb[0].mxu0 %v51
    %v122 = vpop.f32.mrb[0].mxu0
    %v123 = vadd.f32 %v48, %v122
    %v124 = vpop.f32.mrb[0].mxu0
    %125 = vmatprep.mubr.f32.mxu0 0.0
    %126 = vmatmul.mubr.f32.gmra.mrb[0].mxu0 %v54
    %v127 = vpop.f32.mrb[0].mxu0
    %v128 = vadd.f32 %v48, %v127
    %v129 = vpop.f32.mrb[0].mxu0
    %130 = vdwg.mxu0
    %v131 = vlaneseq
    %v132 = vshrl.u32 %v131, 7
    %v133 = vadd.s32 %v132, 8
    %v134 = vlaneseq
    %v135 = vand.u32 %v134, 127
    %vm136 = vcmp.lt.s32.totalorder %v132, 0
    %v137 = vsub.s32 0, %v132
    %v138 = vsel %vm136, %v137, %v132
    %v139 = vshrl.u32 %v138, 1
    %v140 = vand.u32 %v138, 1
    %v141 = vsub.s32 0, %v140
    %v142 = vsel %vm136, %v141, %v140
    %vm143 = vcmp.lt.s32.totalorder %v133, 0
    %v144 = vsub.s32 0, %v133
    %v145 = vsel %vm143, %v144, %v133
    %v146 = vshrl.u32 %v145, 1
    %v147 = vand.u32 %v145, 1
    %v148 = vsub.s32 0, %v147
    %v149 = vsel %vm143, %v148, %v147
    %vm150 = vcmp.ne.s32.totalorder %v142, 0
    %vm151 = vcmp.ne.s32.totalorder %v149, 0
    %vm152 = vcmp.lt.s32.totalorder %v142, 0
    %vm153 = vcmp.lt.s32.totalorder %v149, 0
    %vm154 = vmand %vm152, %vm150
    %vm155 = vmand %vm153, %vm151
    %v156 = vadd.s32 %v142, 2
    %v157 = vadd.s32 %v149, 2
    %v158 = vsel %vm154, %v156, %v142
    %v159 = vsel %vm155, %v157, %v149
    %vm160 = vcmp.lt.s32.totalorder %v135, 0
    %v161 = vsub.s32 0, %v135
    %v162 = vsel %vm160, %v161, %v135
    %v163 = vshrl.u32 %v162, 1
    %v164 = vand.u32 %v162, 1
    %v165 = vsub.s32 0, %v164
    %v166 = vsel %vm160, %v165, %v164
    %vm167 = vcmp.ne.s32.totalorder %v166, 0
    %vm168 = vcmp.lt.s32.totalorder %v166, 0
    %vm169 = vmand %vm168, %vm167
    %v170 = vadd.s32 %v166, 2
    %v171 = vsel %vm169, %v170, %v166
    %vm172 = vcmp.eq.s32.totalorder %v158, %v171
    %vm173 = vcmp.eq.s32.totalorder %v159, %v171
    %v174 = vsel %vm172, 0.0, -1e+30
    %v175 = vsel %vm173, 0.0, -1e+30
    %v176 = vmul.f32 %v123, 0.35355338
    %v177 = vmul.f32 %v128, 0.35355338
    %180 = vrot.lane.b32.xlu0 %v123, 96
    %v181 = vpop.permute.xlu0 %180
    %182 = vrot.lane.b32.xlu0 %v128, 96
    %v183 = vpop.permute.xlu0 %182
    %vm184 = vcmask 64512
    %v186 = vsel %vm184, %v176, 0
    %v189 = vsel %vm184, %v177, 0
    %v191 = vsel %vm184, %v181, 0
    %v193 = vsel %vm184, %v183, 0
    %195 = vmatprep.subr.mxu0 0.0
    %196 = vmatpush1.xpose.msra.mxu0 %v191
    %197 = vmatprep.subr.mxu0 0.0
    %198 = vmatpush1.xpose.msra.mxu0 %v193
    %199 = vmatprep.subr.mxu0 0.0
    %200 = vmatpush1.xpose.msra.mxu0 0.0
    %201 = vmatprep.subr.mxu0 0.0
    %202 = vmatpush1.xpose.msra.mxu0 0.0
    %203 = vmatprep.subr.mxu0 0.0
    %204 = vmatpush1.xpose.msra.mxu0 0.0
    %205 = vmatprep.subr.mxu0 0.0
    %206 = vmatpush1.xpose.msra.mxu0 0.0
    %207 = vmatprep.subr.mxu0 0.0
    %208 = vmatpush1.xpose.msra.mxu0 0.0
    %209 = vmatprep.subr.mxu0 0.0
    %210 = vmatpush1.xpose.msra.mxu0 0.0
    %211 = vmatprep.subr.mxu0 0.0
    %212 = vmatpush1.xpose.msra.mxu0 0.0
    %213 = vmatprep.subr.mxu0 0.0
    %214 = vmatpush1.xpose.msra.mxu0 0.0
    %215 = vmatprep.subr.mxu0 0.0
    %216 = vmatpush1.xpose.msra.mxu0 0.0
    %217 = vmatprep.subr.mxu0 0.0
    %218 = vmatpush1.xpose.msra.mxu0 0.0
    %219 = vmatprep.subr.mxu0 0.0
    %220 = vmatpush1.xpose.msra.mxu0 0.0
    %221 = vmatprep.subr.mxu0 0.0
    %222 = vmatpush1.xpose.msra.mxu0 0.0
    %223 = vmatprep.subr.mxu0 0.0
    %224 = vmatpush1.xpose.msra.mxu0 0.0
    %225 = vmatprep.subr.mxu0 0.0
    %226 = vmatpush1.xpose.msra.mxu0 0.0
    %227 = vmatprep.subr.mxu0 0.0
    %228 = vmatpush1.xpose.msra.mxu0 0.0
    %229 = vmatprep.subr.mxu0 0.0
    %230 = vmatpush1.xpose.msra.mxu0 0.0
    %231 = vmatprep.subr.mxu0 0.0
    %232 = vmatpush1.xpose.msra.mxu0 0.0
    %233 = vmatprep.subr.mxu0 0.0
    %234 = vmatpush1.xpose.msra.mxu0 0.0
    %235 = vmatprep.subr.mxu0 0.0
    %236 = vmatpush1.xpose.msra.mxu0 0.0
    %237 = vmatprep.subr.mxu0 0.0
    %238 = vmatpush1.xpose.msra.mxu0 0.0
    %239 = vmatprep.subr.mxu0 0.0
    %240 = vmatpush1.xpose.msra.mxu0 0.0
    %241 = vmatprep.subr.mxu0 0.0
    %242 = vmatpush1.xpose.msra.mxu0 0.0
    %243 = vmatprep.subr.mxu0 0.0
    %244 = vmatpush1.xpose.msra.mxu0 0.0
    %245 = vmatprep.subr.mxu0 0.0
    %246 = vmatpush1.xpose.msra.mxu0 0.0
    %247 = vmatprep.subr.mxu0 0.0
    %248 = vmatpush1.xpose.msra.mxu0 0.0
    %249 = vmatprep.subr.mxu0 0.0
    %250 = vmatpush1.xpose.msra.mxu0 0.0
    %251 = vmatprep.subr.mxu0 0.0
    %252 = vmatpush1.xpose.msra.mxu0 0.0
    %253 = vmatprep.subr.mxu0 0.0
    %254 = vmatpush1.xpose.msra.mxu0 0.0
    %255 = vmatprep.subr.mxu0 0.0
    %256 = vmatpush1.xpose.msra.mxu0 0.0
    %257 = vmatprep.subr.mxu0 0.0
    %258 = vmatpush1.xpose.msra.mxu0 0.0
    %259 = vmatprep.mubr.f32.mxu0 0.0
    %260 = vmatmul.mubr.f32.gmra.mrb[0].mxu0 %v186
    %v261 = vpop.f32.mrb[0].mxu0
    %v262 = vadd.f32 %v174, %v261
    %v263 = vpop.f32.mrb[0].mxu0
    %264 = vmatprep.mubr.f32.mxu0 0.0
    %265 = vmatmul.mubr.f32.gmra.mrb[0].mxu0 %v189
    %v266 = vpop.f32.mrb[0].mxu0
    %v267 = vadd.f32 %v175, %v266
    %v268 = vpop.f32.mrb[0].mxu0
    %269 = vdwg.mxu0
    %vm270 = vcmask 130048
    %v271 = vsel %vm270, %v262, -inf
    %272 = vmax.xlane.f32.xlu0 %v271
    %v273 = vpop.xlane.xlu0 %272
    %v274 = vsel %vm270, %v267, -inf
    %275 = vmax.xlane.f32.xlu0 %v274
    %v276 = vpop.xlane.xlu0 %275
    %v277 = vsub.f32 %v262, %v273
    %v278 = vsub.f32 %v267, %v276
    %v279 = vmul.f32 %v277, 1.442695
    %v280 = vpow.pop %v279
    %v281 = vmul.f32 %v278, 1.442695
    %v282 = vpow.pop %v281
    %v283 = vsel %vm270, %v280, 0.0
    %284 = vadd.xlane.f32.xlu0 %v283
    %v285 = vpop.xlane.xlu0 %284
    %v286 = vsel %vm270, %v282, 0.0
    %287 = vadd.xlane.f32.xlu0 %v286
    %v288 = vpop.xlane.xlu0 %287
    %v289 = vrcp.pop %v285
    %v290 = vrcp.pop %v288
    %v291 = vmul.f32 %v280, %v289
    %v292 = vmul.f32 %v282, %v290
    %293 = vrot.lane.b32.xlu0 %v123, 64
    %v294 = vpop.permute.xlu0 %293
    %295 = vrot.lane.b32.xlu0 %v128, 64
    %v296 = vpop.permute.xlu0 %295
    %v300 = vsel %vm270, %v291, 0
    %v303 = vsel %vm270, %v292, 0
    %305 = vmatprep.subr.mxu0 0.0
    %306 = vmatpush1.msra.mxu0 %v294
    %307 = vmatprep.subr.mxu0 0.0
    %308 = vmatpush1.msra.mxu0 %v296
    %309 = vmatprep.subr.mxu0 0.0
    %310 = vmatpush1.msra.mxu0 0.0
    %311 = vmatprep.subr.mxu0 0.0
    %312 = vmatpush1.msra.mxu0 0.0
    %313 = vmatprep.subr.mxu0 0.0
    %314 = vmatpush1.msra.mxu0 0.0
    %315 = vmatprep.subr.mxu0 0.0
    %316 = vmatpush1.msra.mxu0 0.0
    %317 = vmatprep.subr.mxu0 0.0
    %318 = vmatpush1.msra.mxu0 0.0
    %319 = vmatprep.subr.mxu0 0.0
    %320 = vmatpush1.msra.mxu0 0.0
    %321 = vmatprep.subr.mxu0 0.0
    %322 = vmatpush1.msra.mxu0 0.0
    %323 = vmatprep.subr.mxu0 0.0
    %324 = vmatpush1.msra.mxu0 0.0
    %325 = vmatprep.subr.mxu0 0.0
    %326 = vmatpush1.msra.mxu0 0.0
    %327 = vmatprep.subr.mxu0 0.0
    %328 = vmatpush1.msra.mxu0 0.0
    %329 = vmatprep.subr.mxu0 0.0
    %330 = vmatpush1.msra.mxu0 0.0
    %331 = vmatprep.subr.mxu0 0.0
    %332 = vmatpush1.msra.mxu0 0.0
    %333 = vmatprep.subr.mxu0 0.0
    %334 = vmatpush1.msra.mxu0 0.0
    %335 = vmatprep.subr.mxu0 0.0
    %336 = vmatpush1.msra.mxu0 0.0
    %337 = vmatprep.subr.mxu0 0.0
    %338 = vmatpush1.msra.mxu0 0.0
    %339 = vmatprep.subr.mxu0 0.0
    %340 = vmatpush1.msra.mxu0 0.0
    %341 = vmatprep.subr.mxu0 0.0
    %342 = vmatpush1.msra.mxu0 0.0
    %343 = vmatprep.subr.mxu0 0.0
    %344 = vmatpush1.msra.mxu0 0.0
    %345 = vmatprep.subr.mxu0 0.0
    %346 = vmatpush1.msra.mxu0 0.0
    %347 = vmatprep.subr.mxu0 0.0
    %348 = vmatpush1.msra.mxu0 0.0
    %349 = vmatprep.subr.mxu0 0.0
    %350 = vmatpush1.msra.mxu0 0.0
    %351 = vmatprep.subr.mxu0 0.0
    %352 = vmatpush1.msra.mxu0 0.0
    %353 = vmatprep.subr.mxu0 0.0
    %354 = vmatpush1.msra.mxu0 0.0
    %355 = vmatprep.subr.mxu0 0.0
    %356 = vmatpush1.msra.mxu0 0.0
    %357 = vmatprep.subr.mxu0 0.0
    %358 = vmatpush1.msra.mxu0 0.0
    %359 = vmatprep.subr.mxu0 0.0
    %360 = vmatpush1.msra.mxu0 0.0
    %361 = vmatprep.subr.mxu0 0.0
    %362 = vmatpush1.msra.mxu0 0.0
    %363 = vmatprep.subr.mxu0 0.0
    %364 = vmatpush1.msra.mxu0 0.0
    %365 = vmatprep.subr.mxu0 0.0
    %366 = vmatpush1.msra.mxu0 0.0
    %367 = vmatprep.subr.mxu0 0.0
    %368 = vmatpush1.msra.mxu0 0.0
    %369 = vmatprep.mubr.f32.mxu0 0.0
    %370 = vmatmul.mubr.f32.gmra.mrb[0].mxu0 %v300
    %v371 = vpop.f32.mrb[0].mxu0
    %v372 = vadd.f32 0.0, %v371
    %v373 = vpop.f32.mrb[0].mxu0
    %374 = vmatprep.mubr.f32.mxu0 0.0
    %375 = vmatmul.mubr.f32.gmra.mrb[0].mxu0 %v303
    %v376 = vpop.f32.mrb[0].mxu0
    %v377 = vadd.f32 0.0, %v376
    %v378 = vpop.f32.mrb[0].mxu0
    %379 = vdwg.mxu0
    %380 = vrot.lane.b32.xlu0 %v176, 120
    %v381 = vpop.permute.xlu0 %380
    %382 = vrot.lane.b32.xlu0 %v177, 120
    %v383 = vpop.permute.xlu0 %382
    %384 = vrot.lane.b32.xlu0 %v123, 88
    %v385 = vpop.permute.xlu0 %384
    %386 = vrot.lane.b32.xlu0 %v128, 88
    %v387 = vpop.permute.xlu0 %386
    %v388 = vsel %vm184, %v381, 0
    %v390 = vsel %vm184, %v383, 0
    %v392 = vsel %vm184, %v385, 0
    %v394 = vsel %vm184, %v387, 0
    %396 = vmatprep.subr.mxu0 0.0
    %397 = vmatpush1.xpose.msra.mxu0 %v392
    %398 = vmatprep.subr.mxu0 0.0
    %399 = vmatpush1.xpose.msra.mxu0 %v394
    %400 = vmatprep.subr.mxu0 0.0
    %401 = vmatpush1.xpose.msra.mxu0 0.0
    %402 = vmatprep.subr.mxu0 0.0
    %403 = vmatpush1.xpose.msra.mxu0 0.0
    %404 = vmatprep.subr.mxu0 0.0
    %405 = vmatpush1.xpose.msra.mxu0 0.0
    %406 = vmatprep.subr.mxu0 0.0
    %407 = vmatpush1.xpose.msra.mxu0 0.0
    %408 = vmatprep.subr.mxu0 0.0
    %409 = vmatpush1.xpose.msra.mxu0 0.0
    %410 = vmatprep.subr.mxu0 0.0
    %411 = vmatpush1.xpose.msra.mxu0 0.0
    %412 = vmatprep.subr.mxu0 0.0
    %413 = vmatpush1.xpose.msra.mxu0 0.0
    %414 = vmatprep.subr.mxu0 0.0
    %415 = vmatpush1.xpose.msra.mxu0 0.0
    %416 = vmatprep.subr.mxu0 0.0
    %417 = vmatpush1.xpose.msra.mxu0 0.0
    %418 = vmatprep.subr.mxu0 0.0
    %419 = vmatpush1.xpose.msra.mxu0 0.0
    %420 = vmatprep.subr.mxu0 0.0
    %421 = vmatpush1.xpose.msra.mxu0 0.0
    %422 = vmatprep.subr.mxu0 0.0
    %423 = vmatpush1.xpose.msra.mxu0 0.0
    %424 = vmatprep.subr.mxu0 0.0
    %425 = vmatpush1.xpose.msra.mxu0 0.0
    %426 = vmatprep.subr.mxu0 0.0
    %427 = vmatpush1.xpose.msra.mxu0 0.0
    %428 = vmatprep.subr.mxu0 0.0
    %429 = vmatpush1.xpose.msra.mxu0 0.0
    %430 = vmatprep.subr.mxu0 0.0
    %431 = vmatpush1.xpose.msra.mxu0 0.0
    %432 = vmatprep.subr.mxu0 0.0
    %433 = vmatpush1.xpose.msra.mxu0 0.0
    %434 = vmatprep.subr.mxu0 0.0
    %435 = vmatpush1.xpose.msra.mxu0 0.0
    %436 = vmatprep.subr.mxu0 0.0
    %437 = vmatpush1.xpose.msra.mxu0 0.0
    %438 = vmatprep.subr.mxu0 0.0
    %439 = vmatpush1.xpose.msra.mxu0 0.0
    %440 = vmatprep.subr.mxu0 0.0
    %441 = vmatpush1.xpose.msra.mxu0 0.0
    %442 = vmatprep.subr.mxu0 0.0
    %443 = vmatpush1.xpose.msra.mxu0 0.0
    %444 = vmatprep.subr.mxu0 0.0
    %445 = vmatpush1.xpose.msra.mxu0 0.0
    %446 = vmatprep.subr.mxu0 0.0
    %447 = vmatpush1.xpose.msra.mxu0 0.0
    %448 = vmatprep.subr.mxu0 0.0
    %449 = vmatpush1.xpose.msra.mxu0 0.0
    %450 = vmatprep.subr.mxu0 0.0
    %451 = vmatpush1.xpose.msra.mxu0 0.0
    %452 = vmatprep.subr.mxu0 0.0
    %453 = vmatpush1.xpose.msra.mxu0 0.0
    %454 = vmatprep.subr.mxu0 0.0
    %455 = vmatpush1.xpose.msra.mxu0 0.0
    %456 = vmatprep.subr.mxu0 0.0
    %457 = vmatpush1.xpose.msra.mxu0 0.0
    %458 = vmatprep.subr.mxu0 0.0
    %459 = vmatpush1.xpose.msra.mxu0 0.0
    %460 = vmatprep.mubr.f32.mxu0 0.0
    %461 = vmatmul.mubr.f32.gmra.mrb[0].mxu0 %v388
    %v462 = vpop.f32.mrb[0].mxu0
    %v463 = vadd.f32 %v174, %v462
    %v464 = vpop.f32.mrb[0].mxu0
    %465 = vmatprep.mubr.f32.mxu0 0.0
    %466 = vmatmul.mubr.f32.gmra.mrb[0].mxu0 %v390
    %v467 = vpop.f32.mrb[0].mxu0
    %v468 = vadd.f32 %v175, %v467
    %v469 = vpop.f32.mrb[0].mxu0
    %470 = vdwg.mxu0
    %v471 = vsel %vm270, %v463, -inf
    %472 = vmax.xlane.f32.xlu0 %v471
    %v473 = vpop.xlane.xlu0 %472
    %v474 = vsel %vm270, %v468, -inf
    %475 = vmax.xlane.f32.xlu0 %v474
    %v476 = vpop.xlane.xlu0 %475
    %v477 = vsub.f32 %v463, %v473
    %v478 = vsub.f32 %v468, %v476
    %v479 = vmul.f32 %v477, 1.442695
    %v480 = vpow.pop %v479
    %v481 = vmul.f32 %v478, 1.442695
    %v482 = vpow.pop %v481
    %v483 = vsel %vm270, %v480, 0.0
    %484 = vadd.xlane.f32.xlu0 %v483
    %v485 = vpop.xlane.xlu0 %484
    %v486 = vsel %vm270, %v482, 0.0
    %487 = vadd.xlane.f32.xlu0 %v486
    %v488 = vpop.xlane.xlu0 %487
    %v489 = vrcp.pop %v485
    %v490 = vrcp.pop %v488
    %v491 = vmul.f32 %v480, %v489
    %v492 = vmul.f32 %v482, %v490
    %493 = vrot.lane.b32.xlu0 %v123, 56
    %v494 = vpop.permute.xlu0 %493
    %495 = vrot.lane.b32.xlu0 %v128, 56
    %v496 = vpop.permute.xlu0 %495
    %v500 = vsel %vm270, %v491, 0
    %v503 = vsel %vm270, %v492, 0
    %505 = vmatprep.subr.mxu0 0.0
    %506 = vmatpush1.msra.mxu0 %v494
    %507 = vmatprep.subr.mxu0 0.0
    %508 = vmatpush1.msra.mxu0 %v496
    %509 = vmatprep.subr.mxu0 0.0
    %510 = vmatpush1.msra.mxu0 0.0
    %511 = vmatprep.subr.mxu0 0.0
    %512 = vmatpush1.msra.mxu0 0.0
    %513 = vmatprep.subr.mxu0 0.0
    %514 = vmatpush1.msra.mxu0 0.0
    %515 = vmatprep.subr.mxu0 0.0
    %516 = vmatpush1.msra.mxu0 0.0
    %517 = vmatprep.subr.mxu0 0.0
    %518 = vmatpush1.msra.mxu0 0.0
    %519 = vmatprep.subr.mxu0 0.0
    %520 = vmatpush1.msra.mxu0 0.0
    %521 = vmatprep.subr.mxu0 0.0
    %522 = vmatpush1.msra.mxu0 0.0
    %523 = vmatprep.subr.mxu0 0.0
    %524 = vmatpush1.msra.mxu0 0.0
    %525 = vmatprep.subr.mxu0 0.0
    %526 = vmatpush1.msra.mxu0 0.0
    %527 = vmatprep.subr.mxu0 0.0
    %528 = vmatpush1.msra.mxu0 0.0
    %529 = vmatprep.subr.mxu0 0.0
    %530 = vmatpush1.msra.mxu0 0.0
    %531 = vmatprep.subr.mxu0 0.0
    %532 = vmatpush1.msra.mxu0 0.0
    %533 = vmatprep.subr.mxu0 0.0
    %534 = vmatpush1.msra.mxu0 0.0
    %535 = vmatprep.subr.mxu0 0.0
    %536 = vmatpush1.msra.mxu0 0.0
    %537 = vmatprep.subr.mxu0 0.0
    %538 = vmatpush1.msra.mxu0 0.0
    %539 = vmatprep.subr.mxu0 0.0
    %540 = vmatpush1.msra.mxu0 0.0
    %541 = vmatprep.subr.mxu0 0.0
    %542 = vmatpush1.msra.mxu0 0.0
    %543 = vmatprep.subr.mxu0 0.0
    %544 = vmatpush1.msra.mxu0 0.0
    %545 = vmatprep.subr.mxu0 0.0
    %546 = vmatpush1.msra.mxu0 0.0
    %547 = vmatprep.subr.mxu0 0.0
    %548 = vmatpush1.msra.mxu0 0.0
    %549 = vmatprep.subr.mxu0 0.0
    %550 = vmatpush1.msra.mxu0 0.0
    %551 = vmatprep.subr.mxu0 0.0
    %552 = vmatpush1.msra.mxu0 0.0
    %553 = vmatprep.subr.mxu0 0.0
    %554 = vmatpush1.msra.mxu0 0.0
    %555 = vmatprep.subr.mxu0 0.0
    %556 = vmatpush1.msra.mxu0 0.0
    %557 = vmatprep.subr.mxu0 0.0
    %558 = vmatpush1.msra.mxu0 0.0
    %559 = vmatprep.subr.mxu0 0.0
    %560 = vmatpush1.msra.mxu0 0.0
    %561 = vmatprep.subr.mxu0 0.0
    %562 = vmatpush1.msra.mxu0 0.0
    %563 = vmatprep.subr.mxu0 0.0
    %564 = vmatpush1.msra.mxu0 0.0
    %565 = vmatprep.subr.mxu0 0.0
    %566 = vmatpush1.msra.mxu0 0.0
    %567 = vmatprep.subr.mxu0 0.0
    %568 = vmatpush1.msra.mxu0 0.0
    %569 = vmatprep.mubr.f32.mxu0 0.0
    %570 = vmatmul.mubr.f32.gmra.mrb[0].mxu0 %v500
    %v571 = vpop.f32.mrb[0].mxu0
    %v572 = vadd.f32 0.0, %v571
    %v573 = vpop.f32.mrb[0].mxu0
    %574 = vmatprep.mubr.f32.mxu0 0.0
    %575 = vmatmul.mubr.f32.gmra.mrb[0].mxu0 %v503
    %v576 = vpop.f32.mrb[0].mxu0
    %v577 = vadd.f32 0.0, %v576
    %v578 = vpop.f32.mrb[0].mxu0
    %579 = vdwg.mxu0
    %v581 = vsel %vm184, %v572, 0
    %v584 = vsel %vm184, %v577, 0
    %586 = vmatprep.subr.mxu0 0.0
    %587 = vmatpush1.msra.mxu0 %v22
    %588 = vmatprep.subr.mxu0 0.0
    %589 = vmatpush1.msra.mxu0 0.0
    %590 = vmatprep.subr.mxu0 0.0
    %591 = vmatpush1.msra.mxu0 0.0
    %592 = vmatprep.subr.mxu0 0.0
    %593 = vmatpush1.msra.mxu0 0.0
    %594 = vmatprep.subr.mxu0 0.0
    %595 = vmatpush1.msra.mxu0 0.0
    %596 = vmatprep.subr.mxu0 0.0
    %597 = vmatpush1.msra.mxu0 0.0
    %598 = vmatprep.subr.mxu0 0.0
    %599 = vmatpush1.msra.mxu0 0.0
    %600 = vmatprep.subr.mxu0 0.0
    %601 = vmatpush1.msra.mxu0 0.0
    %602 = vmatprep.subr.mxu0 0.0
    %603 = vmatpush1.msra.mxu0 0.0
    %604 = vmatprep.subr.mxu0 0.0
    %605 = vmatpush1.msra.mxu0 0.0
    %606 = vmatprep.subr.mxu0 0.0
    %607 = vmatpush1.msra.mxu0 0.0
    %608 = vmatprep.subr.mxu0 0.0
    %609 = vmatpush1.msra.mxu0 0.0
    %610 = vmatprep.subr.mxu0 0.0
    %611 = vmatpush1.msra.mxu0 0.0
    %612 = vmatprep.subr.mxu0 0.0
    %613 = vmatpush1.msra.mxu0 0.0
    %614 = vmatprep.subr.mxu0 0.0
    %615 = vmatpush1.msra.mxu0 0.0
    %616 = vmatprep.subr.mxu0 0.0
    %617 = vmatpush1.msra.mxu0 0.0
    %618 = vmatprep.subr.mxu0 0.0
    %619 = vmatpush1.msra.mxu0 0.0
    %620 = vmatprep.subr.mxu0 0.0
    %621 = vmatpush1.msra.mxu0 0.0
    %622 = vmatprep.subr.mxu0 0.0
    %623 = vmatpush1.msra.mxu0 0.0
    %624 = vmatprep.subr.mxu0 0.0
    %625 = vmatpush1.msra.mxu0 0.0
    %626 = vmatprep.subr.mxu0 0.0
    %627 = vmatpush1.msra.mxu0 0.0
    %628 = vmatprep.subr.mxu0 0.0
    %629 = vmatpush1.msra.mxu0 0.0
    %630 = vmatprep.subr.mxu0 0.0
    %631 = vmatpush1.msra.mxu0 0.0
    %632 = vmatprep.subr.mxu0 0.0
    %633 = vmatpush1.msra.mxu0 0.0
    %634 = vmatprep.subr.mxu0 0.0
    %635 = vmatpush1.msra.mxu0 0.0
    %636 = vmatprep.subr.mxu0 0.0
    %637 = vmatpush1.msra.mxu0 0.0
    %638 = vmatprep.subr.mxu0 0.0
    %639 = vmatpush1.msra.mxu0 0.0
    %640 = vmatprep.subr.mxu0 0.0
    %641 = vmatpush1.msra.mxu0 0.0
    %642 = vmatprep.subr.mxu0 0.0
    %643 = vmatpush1.msra.mxu0 0.0
    %644 = vmatprep.subr.mxu0 0.0
    %645 = vmatpush1.msra.mxu0 0.0
    %646 = vmatprep.subr.mxu0 0.0
    %647 = vmatpush1.msra.mxu0 0.0
    %648 = vmatprep.subr.mxu0 0.0
    %649 = vmatpush1.msra.mxu0 0.0
    %650 = vmatprep.mubr.f32.mxu0 0.0
    %651 = vmatmul.mubr.f32.gmra.mrb[0].mxu0 %v581
    %v652 = vpop.f32.mrb[0].mxu0
    %v653 = vadd.f32 0.0, %v652
    %v654 = vpop.f32.mrb[0].mxu0
    %655 = vmatprep.mubr.f32.mxu0 0.0
    %656 = vmatmul.mubr.f32.gmra.mrb[0].mxu0 %v584
    %v657 = vpop.f32.mrb[0].mxu0
    %v658 = vadd.f32 0.0, %v657
    %v659 = vpop.f32.mrb[0].mxu0
    %660 = vdwg.mxu0
    %v662 = vsel %vm184, %v372, 0
    %v665 = vsel %vm184, %v377, 0
    %667 = vmatprep.subr.mxu0 0.0
    %668 = vmatpush1.msra.mxu0 %v21
    %669 = vmatprep.subr.mxu0 0.0
    %670 = vmatpush1.msra.mxu0 0.0
    %671 = vmatprep.subr.mxu0 0.0
    %672 = vmatpush1.msra.mxu0 0.0
    %673 = vmatprep.subr.mxu0 0.0
    %674 = vmatpush1.msra.mxu0 0.0
    %675 = vmatprep.subr.mxu0 0.0
    %676 = vmatpush1.msra.mxu0 0.0
    %677 = vmatprep.subr.mxu0 0.0
    %678 = vmatpush1.msra.mxu0 0.0
    %679 = vmatprep.subr.mxu0 0.0
    %680 = vmatpush1.msra.mxu0 0.0
    %681 = vmatprep.subr.mxu0 0.0
    %682 = vmatpush1.msra.mxu0 0.0
    %683 = vmatprep.subr.mxu0 0.0
    %684 = vmatpush1.msra.mxu0 0.0
    %685 = vmatprep.subr.mxu0 0.0
    %686 = vmatpush1.msra.mxu0 0.0
    %687 = vmatprep.subr.mxu0 0.0
    %688 = vmatpush1.msra.mxu0 0.0
    %689 = vmatprep.subr.mxu0 0.0
    %690 = vmatpush1.msra.mxu0 0.0
    %691 = vmatprep.subr.mxu0 0.0
    %692 = vmatpush1.msra.mxu0 0.0
    %693 = vmatprep.subr.mxu0 0.0
    %694 = vmatpush1.msra.mxu0 0.0
    %695 = vmatprep.subr.mxu0 0.0
    %696 = vmatpush1.msra.mxu0 0.0
    %697 = vmatprep.subr.mxu0 0.0
    %698 = vmatpush1.msra.mxu0 0.0
    %699 = vmatprep.subr.mxu0 0.0
    %700 = vmatpush1.msra.mxu0 0.0
    %701 = vmatprep.subr.mxu0 0.0
    %702 = vmatpush1.msra.mxu0 0.0
    %703 = vmatprep.subr.mxu0 0.0
    %704 = vmatpush1.msra.mxu0 0.0
    %705 = vmatprep.subr.mxu0 0.0
    %706 = vmatpush1.msra.mxu0 0.0
    %707 = vmatprep.subr.mxu0 0.0
    %708 = vmatpush1.msra.mxu0 0.0
    %709 = vmatprep.subr.mxu0 0.0
    %710 = vmatpush1.msra.mxu0 0.0
    %711 = vmatprep.subr.mxu0 0.0
    %712 = vmatpush1.msra.mxu0 0.0
    %713 = vmatprep.subr.mxu0 0.0
    %714 = vmatpush1.msra.mxu0 0.0
    %715 = vmatprep.subr.mxu0 0.0
    %716 = vmatpush1.msra.mxu0 0.0
    %717 = vmatprep.subr.mxu0 0.0
    %718 = vmatpush1.msra.mxu0 0.0
    %719 = vmatprep.subr.mxu0 0.0
    %720 = vmatpush1.msra.mxu0 0.0
    %721 = vmatprep.subr.mxu0 0.0
    %722 = vmatpush1.msra.mxu0 0.0
    %723 = vmatprep.subr.mxu0 0.0
    %724 = vmatpush1.msra.mxu0 0.0
    %725 = vmatprep.subr.mxu0 0.0
    %726 = vmatpush1.msra.mxu0 0.0
    %727 = vmatprep.subr.mxu0 0.0
    %728 = vmatpush1.msra.mxu0 0.0
    %729 = vmatprep.subr.mxu0 0.0
    %730 = vmatpush1.msra.mxu0 0.0
    %731 = vmatprep.mubr.f32.mxu0 0.0
    %732 = vmatmul.mubr.f32.gmra.mrb[0].mxu0 %v662
    %v733 = vpop.f32.mrb[0].mxu0
    %v734 = vadd.f32 %v653, %v733
    %v735 = vpop.f32.mrb[0].mxu0
    %736 = vmatprep.mubr.f32.mxu0 0.0
    %737 = vmatmul.mubr.f32.gmra.mrb[0].mxu0 %v665
    %v738 = vpop.f32.mrb[0].mxu0
    %v739 = vadd.f32 %v658, %v738
    %v740 = vpop.f32.mrb[0].mxu0
    %741 = vdwg.mxu0
    %742 = vrot.lane.b32.xlu0 %v176, 112
    %v743 = vpop.permute.xlu0 %742
    %744 = vrot.lane.b32.xlu0 %v177, 112
    %v745 = vpop.permute.xlu0 %744
    %746 = vrot.lane.b32.xlu0 %v123, 80
    %v747 = vpop.permute.xlu0 %746
    %748 = vrot.lane.b32.xlu0 %v128, 80
    %v749 = vpop.permute.xlu0 %748
    %v750 = vsel %vm184, %v743, 0
    %v752 = vsel %vm184, %v745, 0
    %v754 = vsel %vm184, %v747, 0
    %v756 = vsel %vm184, %v749, 0
    %758 = vmatprep.subr.mxu0 0.0
    %759 = vmatpush1.xpose.msra.mxu0 %v754
    %760 = vmatprep.subr.mxu0 0.0
    %761 = vmatpush1.xpose.msra.mxu0 %v756
    %762 = vmatprep.subr.mxu0 0.0
    %763 = vmatpush1.xpose.msra.mxu0 0.0
    %764 = vmatprep.subr.mxu0 0.0
    %765 = vmatpush1.xpose.msra.mxu0 0.0
    %766 = vmatprep.subr.mxu0 0.0
    %767 = vmatpush1.xpose.msra.mxu0 0.0
    %768 = vmatprep.subr.mxu0 0.0
    %769 = vmatpush1.xpose.msra.mxu0 0.0
    %770 = vmatprep.subr.mxu0 0.0
    %771 = vmatpush1.xpose.msra.mxu0 0.0
    %772 = vmatprep.subr.mxu0 0.0
    %773 = vmatpush1.xpose.msra.mxu0 0.0
    %774 = vmatprep.subr.mxu0 0.0
    %775 = vmatpush1.xpose.msra.mxu0 0.0
    %776 = vmatprep.subr.mxu0 0.0
    %777 = vmatpush1.xpose.msra.mxu0 0.0
    %778 = vmatprep.subr.mxu0 0.0
    %779 = vmatpush1.xpose.msra.mxu0 0.0
    %780 = vmatprep.subr.mxu0 0.0
    %781 = vmatpush1.xpose.msra.mxu0 0.0
    %782 = vmatprep.subr.mxu0 0.0
    %783 = vmatpush1.xpose.msra.mxu0 0.0
    %784 = vmatprep.subr.mxu0 0.0
    %785 = vmatpush1.xpose.msra.mxu0 0.0
    %786 = vmatprep.subr.mxu0 0.0
    %787 = vmatpush1.xpose.msra.mxu0 0.0
    %788 = vmatprep.subr.mxu0 0.0
    %789 = vmatpush1.xpose.msra.mxu0 0.0
    %790 = vmatprep.subr.mxu0 0.0
    %791 = vmatpush1.xpose.msra.mxu0 0.0
    %792 = vmatprep.subr.mxu0 0.0
    %793 = vmatpush1.xpose.msra.mxu0 0.0
    %794 = vmatprep.subr.mxu0 0.0
    %795 = vmatpush1.xpose.msra.mxu0 0.0
    %796 = vmatprep.subr.mxu0 0.0
    %797 = vmatpush1.xpose.msra.mxu0 0.0
    %798 = vmatprep.subr.mxu0 0.0
    %799 = vmatpush1.xpose.msra.mxu0 0.0
    %800 = vmatprep.subr.mxu0 0.0
    %801 = vmatpush1.xpose.msra.mxu0 0.0
    %802 = vmatprep.subr.mxu0 0.0
    %803 = vmatpush1.xpose.msra.mxu0 0.0
    %804 = vmatprep.subr.mxu0 0.0
    %805 = vmatpush1.xpose.msra.mxu0 0.0
    %806 = vmatprep.subr.mxu0 0.0
    %807 = vmatpush1.xpose.msra.mxu0 0.0
    %808 = vmatprep.subr.mxu0 0.0
    %809 = vmatpush1.xpose.msra.mxu0 0.0
    %810 = vmatprep.subr.mxu0 0.0
    %811 = vmatpush1.xpose.msra.mxu0 0.0
    %812 = vmatprep.subr.mxu0 0.0
    %813 = vmatpush1.xpose.msra.mxu0 0.0
    %814 = vmatprep.subr.mxu0 0.0
    %815 = vmatpush1.xpose.msra.mxu0 0.0
    %816 = vmatprep.subr.mxu0 0.0
    %817 = vmatpush1.xpose.msra.mxu0 0.0
    %818 = vmatprep.subr.mxu0 0.0
    %819 = vmatpush1.xpose.msra.mxu0 0.0
    %820 = vmatprep.subr.mxu0 0.0
    %821 = vmatpush1.xpose.msra.mxu0 0.0
    %822 = vmatprep.mubr.f32.mxu0 0.0
    %823 = vmatmul.mubr.f32.gmra.mrb[0].mxu0 %v750
    %v824 = vpop.f32.mrb[0].mxu0
    %v825 = vadd.f32 %v174, %v824
    %v826 = vpop.f32.mrb[0].mxu0
    %827 = vmatprep.mubr.f32.mxu0 0.0
    %828 = vmatmul.mubr.f32.gmra.mrb[0].mxu0 %v752
    %v829 = vpop.f32.mrb[0].mxu0
    %v830 = vadd.f32 %v175, %v829
    %v831 = vpop.f32.mrb[0].mxu0
    %832 = vdwg.mxu0
    %v833 = vsel %vm270, %v825, -inf
    %834 = vmax.xlane.f32.xlu0 %v833
    %v835 = vpop.xlane.xlu0 %834
    %v836 = vsel %vm270, %v830, -inf
    %837 = vmax.xlane.f32.xlu0 %v836
    %v838 = vpop.xlane.xlu0 %837
    %v839 = vsub.f32 %v825, %v835
    %v840 = vsub.f32 %v830, %v838
    %v841 = vmul.f32 %v839, 1.442695
    %v842 = vpow.pop %v841
    %v843 = vmul.f32 %v840, 1.442695
    %v844 = vpow.pop %v843
    %v845 = vsel %vm270, %v842, 0.0
    %846 = vadd.xlane.f32.xlu0 %v845
    %v847 = vpop.xlane.xlu0 %846
    %v848 = vsel %vm270, %v844, 0.0
    %849 = vadd.xlane.f32.xlu0 %v848
    %v850 = vpop.xlane.xlu0 %849
    %v851 = vrcp.pop %v847
    %v852 = vrcp.pop %v850
    %v853 = vmul.f32 %v842, %v851
    %v854 = vmul.f32 %v844, %v852
    %855 = vrot.lane.b32.xlu0 %v123, 48
    %v856 = vpop.permute.xlu0 %855
    %857 = vrot.lane.b32.xlu0 %v128, 48
    %v858 = vpop.permute.xlu0 %857
    %v862 = vsel %vm270, %v853, 0
    %v865 = vsel %vm270, %v854, 0
    %867 = vmatprep.subr.mxu0 0.0
    %868 = vmatpush1.msra.mxu0 %v856
    %869 = vmatprep.subr.mxu0 0.0
    %870 = vmatpush1.msra.mxu0 %v858
    %871 = vmatprep.subr.mxu0 0.0
    %872 = vmatpush1.msra.mxu0 0.0
    %873 = vmatprep.subr.mxu0 0.0
    %874 = vmatpush1.msra.mxu0 0.0
    %875 = vmatprep.subr.mxu0 0.0
    %876 = vmatpush1.msra.mxu0 0.0
    %877 = vmatprep.subr.mxu0 0.0
    %878 = vmatpush1.msra.mxu0 0.0
    %879 = vmatprep.subr.mxu0 0.0
    %880 = vmatpush1.msra.mxu0 0.0
    %881 = vmatprep.subr.mxu0 0.0
    %882 = vmatpush1.msra.mxu0 0.0
    %883 = vmatprep.subr.mxu0 0.0
    %884 = vmatpush1.msra.mxu0 0.0
    %885 = vmatprep.subr.mxu0 0.0
    %886 = vmatpush1.msra.mxu0 0.0
    %887 = vmatprep.subr.mxu0 0.0
    %888 = vmatpush1.msra.mxu0 0.0
    %889 = vmatprep.subr.mxu0 0.0
    %890 = vmatpush1.msra.mxu0 0.0
    %891 = vmatprep.subr.mxu0 0.0
    %892 = vmatpush1.msra.mxu0 0.0
    %893 = vmatprep.subr.mxu0 0.0
    %894 = vmatpush1.msra.mxu0 0.0
    %895 = vmatprep.subr.mxu0 0.0
    %896 = vmatpush1.msra.mxu0 0.0
    %897 = vmatprep.subr.mxu0 0.0
    %898 = vmatpush1.msra.mxu0 0.0
    %899 = vmatprep.subr.mxu0 0.0
    %900 = vmatpush1.msra.mxu0 0.0
    %901 = vmatprep.subr.mxu0 0.0
    %902 = vmatpush1.msra.mxu0 0.0
    %903 = vmatprep.subr.mxu0 0.0
    %904 = vmatpush1.msra.mxu0 0.0
    %905 = vmatprep.subr.mxu0 0.0
    %906 = vmatpush1.msra.mxu0 0.0
    %907 = vmatprep.subr.mxu0 0.0
    %908 = vmatpush1.msra.mxu0 0.0
    %909 = vmatprep.subr.mxu0 0.0
    %910 = vmatpush1.msra.mxu0 0.0
    %911 = vmatprep.subr.mxu0 0.0
    %912 = vmatpush1.msra.mxu0 0.0
    %913 = vmatprep.subr.mxu0 0.0
    %914 = vmatpush1.msra.mxu0 0.0
    %915 = vmatprep.subr.mxu0 0.0
    %916 = vmatpush1.msra.mxu0 0.0
    %917 = vmatprep.subr.mxu0 0.0
    %918 = vmatpush1.msra.mxu0 0.0
    %919 = vmatprep.subr.mxu0 0.0
    %920 = vmatpush1.msra.mxu0 0.0
    %921 = vmatprep.subr.mxu0 0.0
    %922 = vmatpush1.msra.mxu0 0.0
    %923 = vmatprep.subr.mxu0 0.0
    %924 = vmatpush1.msra.mxu0 0.0
    %925 = vmatprep.subr.mxu0 0.0
    %926 = vmatpush1.msra.mxu0 0.0
    %927 = vmatprep.subr.mxu0 0.0
    %928 = vmatpush1.msra.mxu0 0.0
    %929 = vmatprep.subr.mxu0 0.0
    %930 = vmatpush1.msra.mxu0 0.0
    %931 = vmatprep.mubr.f32.mxu0 0.0
    %932 = vmatmul.mubr.f32.gmra.mrb[0].mxu0 %v862
    %v933 = vpop.f32.mrb[0].mxu0
    %v934 = vadd.f32 0.0, %v933
    %v935 = vpop.f32.mrb[0].mxu0
    %936 = vmatprep.mubr.f32.mxu0 0.0
    %937 = vmatmul.mubr.f32.gmra.mrb[0].mxu0 %v865
    %v938 = vpop.f32.mrb[0].mxu0
    %v939 = vadd.f32 0.0, %v938
    %v940 = vpop.f32.mrb[0].mxu0
    %941 = vdwg.mxu0
    %v943 = vsel %vm184, %v934, 0
    %v946 = vsel %vm184, %v939, 0
    %948 = vmatprep.subr.mxu0 0.0
    %949 = vmatpush1.msra.mxu0 %v23
    %950 = vmatprep.subr.mxu0 0.0
    %951 = vmatpush1.msra.mxu0 0.0
    %952 = vmatprep.subr.mxu0 0.0
    %953 = vmatpush1.msra.mxu0 0.0
    %954 = vmatprep.subr.mxu0 0.0
    %955 = vmatpush1.msra.mxu0 0.0
    %956 = vmatprep.subr.mxu0 0.0
    %957 = vmatpush1.msra.mxu0 0.0
    %958 = vmatprep.subr.mxu0 0.0
    %959 = vmatpush1.msra.mxu0 0.0
    %960 = vmatprep.subr.mxu0 0.0
    %961 = vmatpush1.msra.mxu0 0.0
    %962 = vmatprep.subr.mxu0 0.0
    %963 = vmatpush1.msra.mxu0 0.0
    %964 = vmatprep.subr.mxu0 0.0
    %965 = vmatpush1.msra.mxu0 0.0
    %966 = vmatprep.subr.mxu0 0.0
    %967 = vmatpush1.msra.mxu0 0.0
    %968 = vmatprep.subr.mxu0 0.0
    %969 = vmatpush1.msra.mxu0 0.0
    %970 = vmatprep.subr.mxu0 0.0
    %971 = vmatpush1.msra.mxu0 0.0
    %972 = vmatprep.subr.mxu0 0.0
    %973 = vmatpush1.msra.mxu0 0.0
    %974 = vmatprep.subr.mxu0 0.0
    %975 = vmatpush1.msra.mxu0 0.0
    %976 = vmatprep.subr.mxu0 0.0
    %977 = vmatpush1.msra.mxu0 0.0
    %978 = vmatprep.subr.mxu0 0.0
    %979 = vmatpush1.msra.mxu0 0.0
    %980 = vmatprep.subr.mxu0 0.0
    %981 = vmatpush1.msra.mxu0 0.0
    %982 = vmatprep.subr.mxu0 0.0
    %983 = vmatpush1.msra.mxu0 0.0
    %984 = vmatprep.subr.mxu0 0.0
    %985 = vmatpush1.msra.mxu0 0.0
    %986 = vmatprep.subr.mxu0 0.0
    %987 = vmatpush1.msra.mxu0 0.0
    %988 = vmatprep.subr.mxu0 0.0
    %989 = vmatpush1.msra.mxu0 0.0
    %990 = vmatprep.subr.mxu0 0.0
    %991 = vmatpush1.msra.mxu0 0.0
    %992 = vmatprep.subr.mxu0 0.0
    %993 = vmatpush1.msra.mxu0 0.0
    %994 = vmatprep.subr.mxu0 0.0
    %995 = vmatpush1.msra.mxu0 0.0
    %996 = vmatprep.subr.mxu0 0.0
    %997 = vmatpush1.msra.mxu0 0.0
    %998 = vmatprep.subr.mxu0 0.0
    %999 = vmatpush1.msra.mxu0 0.0
    %1000 = vmatprep.subr.mxu0 0.0
    %1001 = vmatpush1.msra.mxu0 0.0
    %1002 = vmatprep.subr.mxu0 0.0
    %1003 = vmatpush1.msra.mxu0 0.0
    %1004 = vmatprep.subr.mxu0 0.0
    %1005 = vmatpush1.msra.mxu0 0.0
    %1006 = vmatprep.subr.mxu0 0.0
    %1007 = vmatpush1.msra.mxu0 0.0
    %1008 = vmatprep.subr.mxu0 0.0
    %1009 = vmatpush1.msra.mxu0 0.0
    %1010 = vmatprep.subr.mxu0 0.0
    %1011 = vmatpush1.msra.mxu0 0.0
    %1012 = vmatprep.mubr.f32.mxu0 0.0
    %1013 = vmatmul.mubr.f32.gmra.mrb[0].mxu0 %v943
    %v1014 = vpop.f32.mrb[0].mxu0
    %v1015 = vadd.f32 0.0, %v1014
    %v1016 = vpop.f32.mrb[0].mxu0
    %1017 = vmatprep.mubr.f32.mxu0 0.0
    %1018 = vmatmul.mubr.f32.gmra.mrb[0].mxu0 %v946
    %v1019 = vpop.f32.mrb[0].mxu0
    %v1020 = vadd.f32 0.0, %v1019
    %v1021 = vpop.f32.mrb[0].mxu0
    %1022 = vdwg.mxu0
    %v1023 = vadd.f32 %v734, %v1015
    %v1024 = vadd.f32 %v739, %v1020
    %1025 = vrot.lane.b32.xlu0 %v176, 104
    %v1026 = vpop.permute.xlu0 %1025
    %1027 = vrot.lane.b32.xlu0 %v177, 104
    %v1028 = vpop.permute.xlu0 %1027
    %1029 = vrot.lane.b32.xlu0 %v123, 72
    %v1030 = vpop.permute.xlu0 %1029
    %1031 = vrot.lane.b32.xlu0 %v128, 72
    %v1032 = vpop.permute.xlu0 %1031
    %v1033 = vsel %vm184, %v1026, 0
    %v1035 = vsel %vm184, %v1028, 0
    %v1037 = vsel %vm184, %v1030, 0
    %v1039 = vsel %vm184, %v1032, 0
    %1041 = vmatprep.subr.mxu0 0.0
    %1042 = vmatpush1.xpose.msra.mxu0 %v1037
    %1043 = vmatprep.subr.mxu0 0.0
    %1044 = vmatpush1.xpose.msra.mxu0 %v1039
    %1045 = vmatprep.subr.mxu0 0.0
    %1046 = vmatpush1.xpose.msra.mxu0 0.0
    %1047 = vmatprep.subr.mxu0 0.0
    %1048 = vmatpush1.xpose.msra.mxu0 0.0
    %1049 = vmatprep.subr.mxu0 0.0
    %1050 = vmatpush1.xpose.msra.mxu0 0.0
    %1051 = vmatprep.subr.mxu0 0.0
    %1052 = vmatpush1.xpose.msra.mxu0 0.0
    %1053 = vmatprep.subr.mxu0 0.0
    %1054 = vmatpush1.xpose.msra.mxu0 0.0
    %1055 = vmatprep.subr.mxu0 0.0
    %1056 = vmatpush1.xpose.msra.mxu0 0.0
    %1057 = vmatprep.subr.mxu0 0.0
    %1058 = vmatpush1.xpose.msra.mxu0 0.0
    %1059 = vmatprep.subr.mxu0 0.0
    %1060 = vmatpush1.xpose.msra.mxu0 0.0
    %1061 = vmatprep.subr.mxu0 0.0
    %1062 = vmatpush1.xpose.msra.mxu0 0.0
    %1063 = vmatprep.subr.mxu0 0.0
    %1064 = vmatpush1.xpose.msra.mxu0 0.0
    %1065 = vmatprep.subr.mxu0 0.0
    %1066 = vmatpush1.xpose.msra.mxu0 0.0
    %1067 = vmatprep.subr.mxu0 0.0
    %1068 = vmatpush1.xpose.msra.mxu0 0.0
    %1069 = vmatprep.subr.mxu0 0.0
    %1070 = vmatpush1.xpose.msra.mxu0 0.0
    %1071 = vmatprep.subr.mxu0 0.0
    %1072 = vmatpush1.xpose.msra.mxu0 0.0
    %1073 = vmatprep.subr.mxu0 0.0
    %1074 = vmatpush1.xpose.msra.mxu0 0.0
    %1075 = vmatprep.subr.mxu0 0.0
    %1076 = vmatpush1.xpose.msra.mxu0 0.0
    %1077 = vmatprep.subr.mxu0 0.0
    %1078 = vmatpush1.xpose.msra.mxu0 0.0
    %1079 = vmatprep.subr.mxu0 0.0
    %1080 = vmatpush1.xpose.msra.mxu0 0.0
    %1081 = vmatprep.subr.mxu0 0.0
    %1082 = vmatpush1.xpose.msra.mxu0 0.0
    %1083 = vmatprep.subr.mxu0 0.0
    %1084 = vmatpush1.xpose.msra.mxu0 0.0
    %1085 = vmatprep.subr.mxu0 0.0
    %1086 = vmatpush1.xpose.msra.mxu0 0.0
    %1087 = vmatprep.subr.mxu0 0.0
    %1088 = vmatpush1.xpose.msra.mxu0 0.0
    %1089 = vmatprep.subr.mxu0 0.0
    %1090 = vmatpush1.xpose.msra.mxu0 0.0
    %1091 = vmatprep.subr.mxu0 0.0
    %1092 = vmatpush1.xpose.msra.mxu0 0.0
    %1093 = vmatprep.subr.mxu0 0.0
    %1094 = vmatpush1.xpose.msra.mxu0 0.0
    %1095 = vmatprep.subr.mxu0 0.0
    %1096 = vmatpush1.xpose.msra.mxu0 0.0
    %1097 = vmatprep.subr.mxu0 0.0
    %1098 = vmatpush1.xpose.msra.mxu0 0.0
    %1099 = vmatprep.subr.mxu0 0.0
    %1100 = vmatpush1.xpose.msra.mxu0 0.0
    %1101 = vmatprep.subr.mxu0 0.0
    %1102 = vmatpush1.xpose.msra.mxu0 0.0
    %1103 = vmatprep.subr.mxu0 0.0
    %1104 = vmatpush1.xpose.msra.mxu0 0.0
    %1105 = vmatprep.mubr.f32.mxu0 0.0
    %1106 = vmatmul.mubr.f32.gmra.mrb[0].mxu0 %v1033
    %v1107 = vpop.f32.mrb[0].mxu0
    %v1108 = vadd.f32 %v174, %v1107
    %v1109 = vpop.f32.mrb[0].mxu0
    %1110 = vmatprep.mubr.f32.mxu0 0.0
    %1111 = vmatmul.mubr.f32.gmra.mrb[0].mxu0 %v1035
    %v1112 = vpop.f32.mrb[0].mxu0
    %v1113 = vadd.f32 %v175, %v1112
    %v1114 = vpop.f32.mrb[0].mxu0
    %1115 = vdwg.mxu0
    %v1116 = vsel %vm270, %v1108, -inf
    %1117 = vmax.xlane.f32.xlu0 %v1116
    %v1118 = vpop.xlane.xlu0 %1117
    %v1119 = vsel %vm270, %v1113, -inf
    %1120 = vmax.xlane.f32.xlu0 %v1119
    %v1121 = vpop.xlane.xlu0 %1120
    %v1122 = vsub.f32 %v1108, %v1118
    %v1123 = vsub.f32 %v1113, %v1121
    %v1124 = vmul.f32 %v1122, 1.442695
    %v1125 = vpow.pop %v1124
    %v1126 = vmul.f32 %v1123, 1.442695
    %v1127 = vpow.pop %v1126
    %v1128 = vsel %vm270, %v1125, 0.0
    %1129 = vadd.xlane.f32.xlu0 %v1128
    %v1130 = vpop.xlane.xlu0 %1129
    %v1131 = vsel %vm270, %v1127, 0.0
    %1132 = vadd.xlane.f32.xlu0 %v1131
    %v1133 = vpop.xlane.xlu0 %1132
    %v1134 = vrcp.pop %v1130
    %v1135 = vrcp.pop %v1133
    %v1136 = vmul.f32 %v1125, %v1134
    %v1137 = vmul.f32 %v1127, %v1135
    %1138 = vrot.lane.b32.xlu0 %v123, 40
    %v1139 = vpop.permute.xlu0 %1138
    %1140 = vrot.lane.b32.xlu0 %v128, 40
    %v1141 = vpop.permute.xlu0 %1140
    %v1145 = vsel %vm270, %v1136, 0
    %v1148 = vsel %vm270, %v1137, 0
    %1150 = vmatprep.subr.mxu0 0.0
    %1151 = vmatpush1.msra.mxu0 %v1139
    %1152 = vmatprep.subr.mxu0 0.0
    %1153 = vmatpush1.msra.mxu0 %v1141
    %1154 = vmatprep.subr.mxu0 0.0
    %1155 = vmatpush1.msra.mxu0 0.0
    %1156 = vmatprep.subr.mxu0 0.0
    %1157 = vmatpush1.msra.mxu0 0.0
    %1158 = vmatprep.subr.mxu0 0.0
    %1159 = vmatpush1.msra.mxu0 0.0
    %1160 = vmatprep.subr.mxu0 0.0
    %1161 = vmatpush1.msra.mxu0 0.0
    %1162 = vmatprep.subr.mxu0 0.0
    %1163 = vmatpush1.msra.mxu0 0.0
    %1164 = vmatprep.subr.mxu0 0.0
    %1165 = vmatpush1.msra.mxu0 0.0
    %1166 = vmatprep.subr.mxu0 0.0
    %1167 = vmatpush1.msra.mxu0 0.0
    %1168 = vmatprep.subr.mxu0 0.0
    %1169 = vmatpush1.msra.mxu0 0.0
    %1170 = vmatprep.subr.mxu0 0.0
    %1171 = vmatpush1.msra.mxu0 0.0
    %1172 = vmatprep.subr.mxu0 0.0
    %1173 = vmatpush1.msra.mxu0 0.0
    %1174 = vmatprep.subr.mxu0 0.0
    %1175 = vmatpush1.msra.mxu0 0.0
    %1176 = vmatprep.subr.mxu0 0.0
    %1177 = vmatpush1.msra.mxu0 0.0
    %1178 = vmatprep.subr.mxu0 0.0
    %1179 = vmatpush1.msra.mxu0 0.0
    %1180 = vmatprep.subr.mxu0 0.0
    %1181 = vmatpush1.msra.mxu0 0.0
    %1182 = vmatprep.subr.mxu0 0.0
    %1183 = vmatpush1.msra.mxu0 0.0
    %1184 = vmatprep.subr.mxu0 0.0
    %1185 = vmatpush1.msra.mxu0 0.0
    %1186 = vmatprep.subr.mxu0 0.0
    %1187 = vmatpush1.msra.mxu0 0.0
    %1188 = vmatprep.subr.mxu0 0.0
    %1189 = vmatpush1.msra.mxu0 0.0
    %1190 = vmatprep.subr.mxu0 0.0
    %1191 = vmatpush1.msra.mxu0 0.0
    %1192 = vmatprep.subr.mxu0 0.0
    %1193 = vmatpush1.msra.mxu0 0.0
    %1194 = vmatprep.subr.mxu0 0.0
    %1195 = vmatpush1.msra.mxu0 0.0
    %1196 = vmatprep.subr.mxu0 0.0
    %1197 = vmatpush1.msra.mxu0 0.0
    %1198 = vmatprep.subr.mxu0 0.0
    %1199 = vmatpush1.msra.mxu0 0.0
    %1200 = vmatprep.subr.mxu0 0.0
    %1201 = vmatpush1.msra.mxu0 0.0
    %1202 = vmatprep.subr.mxu0 0.0
    %1203 = vmatpush1.msra.mxu0 0.0
    %1204 = vmatprep.subr.mxu0 0.0
    %1205 = vmatpush1.msra.mxu0 0.0
    %1206 = vmatprep.subr.mxu0 0.0
    %1207 = vmatpush1.msra.mxu0 0.0
    %1208 = vmatprep.subr.mxu0 0.0
    %1209 = vmatpush1.msra.mxu0 0.0
    %1210 = vmatprep.subr.mxu0 0.0
    %1211 = vmatpush1.msra.mxu0 0.0
    %1212 = vmatprep.subr.mxu0 0.0
    %1213 = vmatpush1.msra.mxu0 0.0
    %1214 = vmatprep.mubr.f32.mxu0 0.0
    %1215 = vmatmul.mubr.f32.gmra.mrb[0].mxu0 %v1145
    %v1216 = vpop.f32.mrb[0].mxu0
    %v1217 = vadd.f32 0.0, %v1216
    %v1218 = vpop.f32.mrb[0].mxu0
    %1219 = vmatprep.mubr.f32.mxu0 0.0
    %1220 = vmatmul.mubr.f32.gmra.mrb[0].mxu0 %v1148
    %v1221 = vpop.f32.mrb[0].mxu0
    %v1222 = vadd.f32 0.0, %v1221
    %v1223 = vpop.f32.mrb[0].mxu0
    %1224 = vdwg.mxu0
    %v1226 = vsel %vm184, %v1217, 0
    %v1229 = vsel %vm184, %v1222, 0
    %1231 = vmatprep.subr.mxu0 0.0
    %1232 = vmatpush1.msra.mxu0 %v24
    %1233 = vmatprep.subr.mxu0 0.0
    %1234 = vmatpush1.msra.mxu0 0.0
    %1235 = vmatprep.subr.mxu0 0.0
    %1236 = vmatpush1.msra.mxu0 0.0
    %1237 = vmatprep.subr.mxu0 0.0
    %1238 = vmatpush1.msra.mxu0 0.0
    %1239 = vmatprep.subr.mxu0 0.0
    %1240 = vmatpush1.msra.mxu0 0.0
    %1241 = vmatprep.subr.mxu0 0.0
    %1242 = vmatpush1.msra.mxu0 0.0
    %1243 = vmatprep.subr.mxu0 0.0
    %1244 = vmatpush1.msra.mxu0 0.0
    %1245 = vmatprep.subr.mxu0 0.0
    %1246 = vmatpush1.msra.mxu0 0.0
    %1247 = vmatprep.subr.mxu0 0.0
    %1248 = vmatpush1.msra.mxu0 0.0
    %1249 = vmatprep.subr.mxu0 0.0
    %1250 = vmatpush1.msra.mxu0 0.0
    %1251 = vmatprep.subr.mxu0 0.0
    %1252 = vmatpush1.msra.mxu0 0.0
    %1253 = vmatprep.subr.mxu0 0.0
    %1254 = vmatpush1.msra.mxu0 0.0
    %1255 = vmatprep.subr.mxu0 0.0
    %1256 = vmatpush1.msra.mxu0 0.0
    %1257 = vmatprep.subr.mxu0 0.0
    %1258 = vmatpush1.msra.mxu0 0.0
    %1259 = vmatprep.subr.mxu0 0.0
    %1260 = vmatpush1.msra.mxu0 0.0
    %1261 = vmatprep.subr.mxu0 0.0
    %1262 = vmatpush1.msra.mxu0 0.0
    %1263 = vmatprep.subr.mxu0 0.0
    %1264 = vmatpush1.msra.mxu0 0.0
    %1265 = vmatprep.subr.mxu0 0.0
    %1266 = vmatpush1.msra.mxu0 0.0
    %1267 = vmatprep.subr.mxu0 0.0
    %1268 = vmatpush1.msra.mxu0 0.0
    %1269 = vmatprep.subr.mxu0 0.0
    %1270 = vmatpush1.msra.mxu0 0.0
    %1271 = vmatprep.subr.mxu0 0.0
    %1272 = vmatpush1.msra.mxu0 0.0
    %1273 = vmatprep.subr.mxu0 0.0
    %1274 = vmatpush1.msra.mxu0 0.0
    %1275 = vmatprep.subr.mxu0 0.0
    %1276 = vmatpush1.msra.mxu0 0.0
    %1277 = vmatprep.subr.mxu0 0.0
    %1278 = vmatpush1.msra.mxu0 0.0
    %1279 = vmatprep.subr.mxu0 0.0
    %1280 = vmatpush1.msra.mxu0 0.0
    %1281 = vmatprep.subr.mxu0 0.0
    %1282 = vmatpush1.msra.mxu0 0.0
    %1283 = vmatprep.subr.mxu0 0.0
    %1284 = vmatpush1.msra.mxu0 0.0
    %1285 = vmatprep.subr.mxu0 0.0
    %1286 = vmatpush1.msra.mxu0 0.0
    %1287 = vmatprep.subr.mxu0 0.0
    %1288 = vmatpush1.msra.mxu0 0.0
    %1289 = vmatprep.subr.mxu0 0.0
    %1290 = vmatpush1.msra.mxu0 0.0
    %1291 = vmatprep.subr.mxu0 0.0
    %1292 = vmatpush1.msra.mxu0 0.0
    %1293 = vmatprep.subr.mxu0 0.0
    %1294 = vmatpush1.msra.mxu0 0.0
    %1295 = vmatprep.mubr.f32.mxu0 0.0
    %1296 = vmatmul.mubr.f32.gmra.mrb[0].mxu0 %v1226
    %v1297 = vpop.f32.mrb[0].mxu0
    %v1298 = vadd.f32 0.0, %v1297
    %v1299 = vpop.f32.mrb[0].mxu0
    %1300 = vmatprep.mubr.f32.mxu0 0.0
    %1301 = vmatmul.mubr.f32.gmra.mrb[0].mxu0 %v1229
    %v1302 = vpop.f32.mrb[0].mxu0
    %v1303 = vadd.f32 0.0, %v1302
    %v1304 = vpop.f32.mrb[0].mxu0
    %1305 = vdwg.mxu0
    %v1306 = vadd.f32 %v1023, %v1298
    %v1307 = vadd.f32 %v1024, %v1303
    %v1308 = vlaneseq
    %v1309 = vshrl.u32 %v1308, 7
    %v1310 = vsub.s32 0, %v1309
    %v1311 = vrot.slane %v38, %v1310
    %v1312 = vadd.f32 %v1306, %v1311
    %v1313 = vadd.f32 %v1307, %v1311
    %v1314 = vadd.f32 %v15, %v1312
    %v1315 = vadd.f32 %v16, %v1313
    %v1316 = vsel %vm49, %v1314, 0.0
    %1317 = vadd.xlane.f32.xlu0 %v1316
    %v1318 = vpop.xlane.xlu0 %1317
    %v1319 = vsel %vm49, %v1315, 0.0
    %1320 = vadd.xlane.f32.xlu0 %v1319
    %v1321 = vpop.xlane.xlu0 %1320
    %v1322 = vrcp.pop 32.0
    %v1323 = vmul.f32 %v1318, %v1322
    %v1324 = vmul.f32 %v1321, %v1322
    %v1325 = vsub.f32 %v1314, %v1323
    %v1326 = vsub.f32 %v1315, %v1324
    %v1327 = vmul.f32 %v1325, %v1325
    %v1328 = vmul.f32 %v1326, %v1326
    %v1329 = vsel %vm49, %v1327, 0.0
    %1330 = vadd.xlane.f32.xlu0 %v1329
    %v1331 = vpop.xlane.xlu0 %1330
    %v1332 = vsel %vm49, %v1328, 0.0
    %1333 = vadd.xlane.f32.xlu0 %v1332
    %v1334 = vpop.xlane.xlu0 %1333
    %v1335 = vmul.f32 %v1331, %v1322
    %v1336 = vmul.f32 %v1334, %v1322
    %v1337 = vadd.f32 %v1335, 1e-05
    %v1338 = vadd.f32 %v1336, 1e-05
    %v1339 = vrsqrt.pop %v1337
    %v1340 = vrsqrt.pop %v1338
    %v1341 = vmul.f32 %v1325, %v1339
    %v1342 = vmul.f32 %v1326, %v1340
    %v1343 = vlaneseq
    %v1344 = vshrl.u32 %v1343, 7
    %v1345 = vsub.s32 0, %v1344
    %v1346 = vrot.slane %v39, %v1345
    %v1347 = vmul.f32 %v1341, %v1346
    %v1348 = vmul.f32 %v1342, %v1346
    %v1349 = vlaneseq
    %v1350 = vshrl.u32 %v1349, 7
    %v1351 = vsub.s32 0, %v1350
    %v1352 = vrot.slane %v40, %v1351
    %v1353 = vadd.f32 %v1347, %v1352
    %v1354 = vadd.f32 %v1348, %v1352
    %v1355 = vlaneseq
    %v1356 = vshrl.u32 %v1355, 7
    %v1357 = vsub.s32 0, %v1356
    %v1358 = vrot.slane %v41, %v1357
    %v1360 = vsel %vm49, %v1353, 0
    %v1363 = vsel %vm49, %v1354, 0
    %1365 = vmatprep.subr.mxu0 0.0
    %1366 = vmatpush1.msra.mxu0 %v25
    %1367 = vmatprep.subr.mxu0 0.0
    %1368 = vmatpush1.msra.mxu0 %v26
    %1369 = vmatprep.subr.mxu0 0.0
    %1370 = vmatpush1.msra.mxu0 %v27
    %1371 = vmatprep.subr.mxu0 0.0
    %1372 = vmatpush1.msra.mxu0 %v28
    %1373 = vmatprep.subr.mxu0 0.0
    %1374 = vmatpush1.msra.mxu0 0.0
    %1375 = vmatprep.subr.mxu0 0.0
    %1376 = vmatpush1.msra.mxu0 0.0
    %1377 = vmatprep.subr.mxu0 0.0
    %1378 = vmatpush1.msra.mxu0 0.0
    %1379 = vmatprep.subr.mxu0 0.0
    %1380 = vmatpush1.msra.mxu0 0.0
    %1381 = vmatprep.subr.mxu0 0.0
    %1382 = vmatpush1.msra.mxu0 0.0
    %1383 = vmatprep.subr.mxu0 0.0
    %1384 = vmatpush1.msra.mxu0 0.0
    %1385 = vmatprep.subr.mxu0 0.0
    %1386 = vmatpush1.msra.mxu0 0.0
    %1387 = vmatprep.subr.mxu0 0.0
    %1388 = vmatpush1.msra.mxu0 0.0
    %1389 = vmatprep.subr.mxu0 0.0
    %1390 = vmatpush1.msra.mxu0 0.0
    %1391 = vmatprep.subr.mxu0 0.0
    %1392 = vmatpush1.msra.mxu0 0.0
    %1393 = vmatprep.subr.mxu0 0.0
    %1394 = vmatpush1.msra.mxu0 0.0
    %1395 = vmatprep.subr.mxu0 0.0
    %1396 = vmatpush1.msra.mxu0 0.0
    %1397 = vmatprep.subr.mxu0 0.0
    %1398 = vmatpush1.msra.mxu0 0.0
    %1399 = vmatprep.subr.mxu0 0.0
    %1400 = vmatpush1.msra.mxu0 0.0
    %1401 = vmatprep.subr.mxu0 0.0
    %1402 = vmatpush1.msra.mxu0 0.0
    %1403 = vmatprep.subr.mxu0 0.0
    %1404 = vmatpush1.msra.mxu0 0.0
    %1405 = vmatprep.subr.mxu0 0.0
    %1406 = vmatpush1.msra.mxu0 0.0
    %1407 = vmatprep.subr.mxu0 0.0
    %1408 = vmatpush1.msra.mxu0 0.0
    %1409 = vmatprep.subr.mxu0 0.0
    %1410 = vmatpush1.msra.mxu0 0.0
    %1411 = vmatprep.subr.mxu0 0.0
    %1412 = vmatpush1.msra.mxu0 0.0
    %1413 = vmatprep.subr.mxu0 0.0
    %1414 = vmatpush1.msra.mxu0 0.0
    %1415 = vmatprep.subr.mxu0 0.0
    %1416 = vmatpush1.msra.mxu0 0.0
    %1417 = vmatprep.subr.mxu0 0.0
    %1418 = vmatpush1.msra.mxu0 0.0
    %1419 = vmatprep.subr.mxu0 0.0
    %1420 = vmatpush1.msra.mxu0 0.0
    %1421 = vmatprep.subr.mxu0 0.0
    %1422 = vmatpush1.msra.mxu0 0.0
    %1423 = vmatprep.subr.mxu0 0.0
    %1424 = vmatpush1.msra.mxu0 0.0
    %1425 = vmatprep.subr.mxu0 0.0
    %1426 = vmatpush1.msra.mxu0 0.0
    %1427 = vmatprep.subr.mxu0 0.0
    %1428 = vmatpush1.msra.mxu0 0.0
    %1429 = vmatprep.mubr.f32.mxu0 0.0
    %1430 = vmatmul.mubr.f32.gmra.mrb[0].mxu0 %v1360
    %v1431 = vpop.f32.mrb[0].mxu0
    %v1432 = vadd.f32 %v1358, %v1431
    %v1433 = vpop.f32.mrb[0].mxu0
    %1434 = vmatprep.mubr.f32.mxu0 0.0
    %1435 = vmatmul.mubr.f32.gmra.mrb[0].mxu0 %v1363
    %v1436 = vpop.f32.mrb[0].mxu0
    %v1437 = vadd.f32 %v1358, %v1436
    %v1438 = vpop.f32.mrb[0].mxu0
    %1439 = vdwg.mxu0
    %v1440 = vmax.f32 %v1432, 0.0
    %v1441 = vmax.f32 %v1437, 0.0
    %v1442 = vlaneseq
    %v1443 = vshrl.u32 %v1442, 7
    %v1444 = vsub.s32 0, %v1443
    %v1445 = vrot.slane %v42, %v1444
    %vm1446 = vcmask 523264
    %v1448 = vsel %vm1446, %v1440, 0
    %v1451 = vsel %vm1446, %v1441, 0
    %1453 = vmatprep.subr.mxu0 0.0
    %1454 = vmatpush1.msra.mxu0 %v29
    %1455 = vmatprep.subr.mxu0 0.0
    %1456 = vmatpush1.msra.mxu0 %v30
    %1457 = vmatprep.subr.mxu0 0.0
    %1458 = vmatpush1.msra.mxu0 %v31
    %1459 = vmatprep.subr.mxu0 0.0
    %1460 = vmatpush1.msra.mxu0 %v32
    %1461 = vmatprep.subr.mxu0 0.0
    %1462 = vmatpush1.msra.mxu0 %v33
    %1463 = vmatprep.subr.mxu0 0.0
    %1464 = vmatpush1.msra.mxu0 %v34
    %1465 = vmatprep.subr.mxu0 0.0
    %1466 = vmatpush1.msra.mxu0 %v35
    %1467 = vmatprep.subr.mxu0 0.0
    %1468 = vmatpush1.msra.mxu0 %v36
    %1469 = vmatprep.subr.mxu0 0.0
    %1470 = vmatpush1.msra.mxu0 0.0
    %1471 = vmatprep.subr.mxu0 0.0
    %1472 = vmatpush1.msra.mxu0 0.0
    %1473 = vmatprep.subr.mxu0 0.0
    %1474 = vmatpush1.msra.mxu0 0.0
    %1475 = vmatprep.subr.mxu0 0.0
    %1476 = vmatpush1.msra.mxu0 0.0
    %1477 = vmatprep.subr.mxu0 0.0
    %1478 = vmatpush1.msra.mxu0 0.0
    %1479 = vmatprep.subr.mxu0 0.0
    %1480 = vmatpush1.msra.mxu0 0.0
    %1481 = vmatprep.subr.mxu0 0.0
    %1482 = vmatpush1.msra.mxu0 0.0
    %1483 = vmatprep.subr.mxu0 0.0
    %1484 = vmatpush1.msra.mxu0 0.0
    %1485 = vmatprep.subr.mxu0 0.0
    %1486 = vmatpush1.msra.mxu0 0.0
    %1487 = vmatprep.subr.mxu0 0.0
    %1488 = vmatpush1.msra.mxu0 0.0
    %1489 = vmatprep.subr.mxu0 0.0
    %1490 = vmatpush1.msra.mxu0 0.0
    %1491 = vmatprep.subr.mxu0 0.0
    %1492 = vmatpush1.msra.mxu0 0.0
    %1493 = vmatprep.subr.mxu0 0.0
    %1494 = vmatpush1.msra.mxu0 0.0
    %1495 = vmatprep.subr.mxu0 0.0
    %1496 = vmatpush1.msra.mxu0 0.0
    %1497 = vmatprep.subr.mxu0 0.0
    %1498 = vmatpush1.msra.mxu0 0.0
    %1499 = vmatprep.subr.mxu0 0.0
    %1500 = vmatpush1.msra.mxu0 0.0
    %1501 = vmatprep.subr.mxu0 0.0
    %1502 = vmatpush1.msra.mxu0 0.0
    %1503 = vmatprep.subr.mxu0 0.0
    %1504 = vmatpush1.msra.mxu0 0.0
    %1505 = vmatprep.subr.mxu0 0.0
    %1506 = vmatpush1.msra.mxu0 0.0
    %1507 = vmatprep.subr.mxu0 0.0
    %1508 = vmatpush1.msra.mxu0 0.0
    %1509 = vmatprep.subr.mxu0 0.0
    %1510 = vmatpush1.msra.mxu0 0.0
    %1511 = vmatprep.subr.mxu0 0.0
    %1512 = vmatpush1.msra.mxu0 0.0
    %1513 = vmatprep.subr.mxu0 0.0
    %1514 = vmatpush1.msra.mxu0 0.0
    %1515 = vmatprep.subr.mxu0 0.0
    %1516 = vmatpush1.msra.mxu0 0.0
    %1517 = vmatprep.mubr.f32.mxu0 0.0
    %1518 = vmatmul.mubr.f32.gmra.mrb[0].mxu0 %v1448
    %v1519 = vpop.f32.mrb[0].mxu0
    %v1520 = vadd.f32 %v1445, %v1519
    %v1521 = vpop.f32.mrb[0].mxu0
    %1522 = vmatprep.mubr.f32.mxu0 0.0
    %1523 = vmatmul.mubr.f32.gmra.mrb[0].mxu0 %v1451
    %v1524 = vpop.f32.mrb[0].mxu0
    %v1525 = vadd.f32 %v1445, %v1524
    %v1526 = vpop.f32.mrb[0].mxu0
    %1527 = vdwg.mxu0
    %v1528 = vadd.f32 %v1353, %v1520
    %v1529 = vadd.f32 %v1354, %v1525
    %v1530 = vsel %vm49, %v1528, 0.0
    %1531 = vadd.xlane.f32.xlu0 %v1530
    %v1532 = vpop.xlane.xlu0 %1531
    %v1533 = vsel %vm49, %v1529, 0.0
    %1534 = vadd.xlane.f32.xlu0 %v1533
    %v1535 = vpop.xlane.xlu0 %1534
    %v1536 = vmul.f32 %v1532, %v1322
    %v1537 = vmul.f32 %v1535, %v1322
    %v1538 = vsub.f32 %v1528, %v1536
    %v1539 = vsub.f32 %v1529, %v1537
    %v1540 = vmul.f32 %v1538, %v1538
    %v1541 = vmul.f32 %v1539, %v1539
    %v1542 = vsel %vm49, %v1540, 0.0
    %1543 = vadd.xlane.f32.xlu0 %v1542
    %v1544 = vpop.xlane.xlu0 %1543
    %v1545 = vsel %vm49, %v1541, 0.0
    %1546 = vadd.xlane.f32.xlu0 %v1545
    %v1547 = vpop.xlane.xlu0 %1546
    %v1548 = vmul.f32 %v1544, %v1322
    %v1549 = vmul.f32 %v1547, %v1322
    %v1550 = vadd.f32 %v1548, 1e-05
    %v1551 = vadd.f32 %v1549, 1e-05
    %v1552 = vrsqrt.pop %v1550
    %v1553 = vrsqrt.pop %v1551
    %v1554 = vmul.f32 %v1538, %v1552
    %v1555 = vmul.f32 %v1539, %v1553
    %v1556 = vlaneseq
    %v1557 = vshrl.u32 %v1556, 7
    %v1558 = vsub.s32 0, %v1557
    %v1559 = vrot.slane %v43, %v1558
    %v1560 = vmul.f32 %v1554, %v1559
    %v1561 = vmul.f32 %v1555, %v1559
    %v1562 = vlaneseq
    %v1563 = vshrl.u32 %v1562, 7
    %v1564 = vsub.s32 0, %v1563
    %v1565 = vrot.slane %v44, %v1564
    %v1566 = vadd.f32 %v1560, %v1565
    %v1567 = vadd.f32 %v1561, %v1565
    %1568 = vst.msk [vmem:[#allocation2] sm:$0xff] %vm49, %v1566
    %1569 = vst.msk [vmem:[#allocation2 + $0x8] sm:$0xff] %vm49, %v1567
    // Predicated region
    $region14: #{transformer_decoder_layer.1} parent=1 // pred_check
      _
    $region15: #{transformer_decoder_layer.1} parent=1 // pred_check_branch
      %1571 = sbr.rel (0) target = $region17
    $region16: #{transformer_decoder_layer.1} parent=1 // pred_region
      %s1573 = ssub.s32 256, 256
      %1574 = vsyncadd [#allocation3], %s1573
      %s1575 = sshll.u32 [#allocation2], 4
      %s1576 = int_to_ptr.vmem [resolvable:$true] %s1575
      %1581 = dma.vmem_to_hbm [thread:$0]  %s1576, 256, %s3, [#allocation3], 128, 128, 8
    $region17: #{transformer_decoder_layer.1} parent=1 // pred_fallthru
      _
    // Predicated region
    $region18: #{transformer_decoder_layer.1} parent=1 // pred_check
      _
    $region19: #{transformer_decoder_layer.1} parent=1 // pred_check_branch
      %1583 = sbr.rel (0) target = $region21
    $region20: #{transformer_decoder_layer.1} parent=1 // pred_region
      %1584 = dma.done [#allocation3], 256
    $region21: #{transformer_decoder_layer.1} parent=1 // pred_fallthru
      _
    %1585 = vsyncpa [#allocation3], 1

</llo_original>
